<compile_context>
chip_gen: v7x
topology: tpu7x:2x2x1
jax: 0.10.0
libtpu: 0.0.40
codegen_flags: <defaults>
</compile_context>

<pallas_src>
import jax
import jax.numpy as jnp
from jax.experimental import pallas as pl
from jax.experimental.pallas import tpu as pltpu

EPS = 1e-5               # PyTorch BatchNorm1d default eps

IN_FEATURES = 784 * 3    # 2352 (multiple of 8; used unpadded as the full K dim)
HIDDEN = 256
OUT = 10
OUT_PAD = 128            # lane-dense output width (sliced back to 10 in wrapper)
TM_MAX = 512             # max batch tile (amortizes per-step overhead, fits VMEM)


def mlp_kernel(x_ref, w1_ref, b1_ref, w2_ref, b2_ref, w3_ref, b3_ref, o_ref):
    # layer1: Linear (eval-mode BN folded into W/b) + ReLU.
    # x is cast to bf16 in-kernel (no separate HBM pad/cast pass in the wrapper).
    x = x_ref[...].astype(jnp.bfloat16)
    h = jnp.dot(x, w1_ref[...], preferred_element_type=jnp.float32)
    h = jnp.maximum(h + b1_ref[...], 0.0)

    # layer2: Linear (Dropout = identity in eval, BN folded) + ReLU
    h = jnp.dot(h.astype(jnp.bfloat16), w2_ref[...],
                preferred_element_type=jnp.float32)
    h = jnp.maximum(h + b2_ref[...], 0.0)

    # layer3: Linear (output zero-padded to 128 lanes, stored bf16 for cheap writeback)
    o = jnp.dot(h.astype(jnp.bfloat16), w3_ref[...],
                preferred_element_type=jnp.float32) + b3_ref[...]
    o_ref[...] = o.astype(o_ref.dtype)


def _fold_bn(w, b, gamma, beta, mean, var):
    """Fold eval-mode BatchNorm1d into the preceding Linear: BN(xW+b) = xW' + b'."""
    scale = gamma * jax.lax.rsqrt(var + EPS)          # (1, F)
    return w * scale, (b - mean) * scale + beta


def prepare_kernel_params(params):
    (w1, b1, g1, be1, m1, v1,
     w2, b2, g2, be2, m2, v2,
     w3, b3) = params
    w1f, b1f = _fold_bn(w1, b1, g1, be1, m1, v1)
    w2f, b2f = _fold_bn(w2, b2, g2, be2, m2, v2)

    w1p = w1f.astype(jnp.bfloat16)                                    # (2352, 256)
    w2p = w2f.astype(jnp.bfloat16)                                    # (256, 256)
    w3p = jnp.pad(w3, ((0, 0), (0, OUT_PAD - OUT))).astype(jnp.bfloat16)
    b3p = jnp.pad(b3, ((0, 0), (0, OUT_PAD - OUT))).astype(jnp.float32)
    return (w1p, b1f.astype(jnp.float32),
            w2p, b2f.astype(jnp.float32),
            w3p, b3p)


def _round_up(x, m):
    return ((x + m - 1) // m) * m


def _choose_tm(B, tm_max=TM_MAX):
    """Adaptive batch tile.

    Multiple of 16 (clean bf16 sublane packing for the output); aims for >= 2
    grid steps when B allows (keeps both v7x TensorCores busy) while avoiding
    huge zero-padding at small B.
    """
    if B >= 2 * tm_max:
        return tm_max
    return max(16, min(tm_max, _round_up(pl.cdiv(B, 2), 16)))


def forward(x, params, tm=None):
    """Fused 3-layer MLP, tiled over the batch dimension."""
    B = x.shape[0]
    assert x.shape[1] == IN_FEATURES, x.shape
    kparams = prepare_kernel_params(params)

    if tm is None:
        tm = _choose_tm(B)
    b_pad = pl.cdiv(B, tm) * tm
    xp = jnp.pad(x, ((0, b_pad - B), (0, 0))) if b_pad != B else x

    const = lambda i: (0, 0)   # weights: same block every grid step -> stay resident
    out = pl.pallas_call(
        mlp_kernel,
        out_shape=jax.ShapeDtypeStruct((b_pad, OUT_PAD), jnp.bfloat16),
        grid=(b_pad // tm,),
        in_specs=[
            pl.BlockSpec((tm, IN_FEATURES), lambda i: (i, 0)),  # x tile (pipelined)
            pl.BlockSpec((IN_FEATURES, HIDDEN), const),         # w1 (BN-folded, bf16)
            pl.BlockSpec((1, HIDDEN), const),                   # b1
            pl.BlockSpec((HIDDEN, HIDDEN), const),               # w2
            pl.BlockSpec((1, HIDDEN), const),                    # b2
            pl.BlockSpec((HIDDEN, OUT_PAD), const),               # w3 (lane-padded)
            pl.BlockSpec((1, OUT_PAD), const),                    # b3
        ],
        out_specs=pl.BlockSpec((tm, OUT_PAD), lambda i: (i, 0)),
        compiler_params=pltpu.CompilerParams(
            dimension_semantics=("parallel",),
            vmem_limit_bytes=32 * 1024 * 1024,
        ),
    )(xp, *kparams)
    return out[:B, :OUT].astype(jnp.float32)


def init_params(key):
    """Deterministic synthetic init (mirrors PyTorch Linear default U(-1/sqrt(fan_in), +))."""
    ks = jax.random.split(key, 12)

    def linear(kw, kb, fan_in, fan_out):
        bound = 1.0 / jnp.sqrt(jnp.float32(fan_in))
        w = jax.random.uniform(kw, (fan_in, fan_out), jnp.float32, -bound, bound)
        b = jax.random.uniform(kb, (1, fan_out), jnp.float32, -bound, bound)
        return w, b

    def bn(kg, kb, km, kv, feat):
        gamma = jax.random.uniform(kg, (1, feat), jnp.float32, 0.5, 1.5)
        beta = 0.1 * jax.random.normal(kb, (1, feat), jnp.float32)
        rmean = 0.1 * jax.random.normal(km, (1, feat), jnp.float32)
        rvar = jax.random.uniform(kv, (1, feat), jnp.float32, 0.5, 1.5)
        return gamma, beta, rmean, rvar

    w1, b1 = linear(ks[0], ks[1], IN_FEATURES, HIDDEN)
    g1, be1, m1, v1 = bn(ks[2], ks[3], ks[4], ks[5], HIDDEN)
    w2, b2 = linear(ks[6], ks[7], HIDDEN, HIDDEN)
    g2, be2, m2, v2 = bn(ks[8], ks[9], ks[10], ks[11], HIDDEN)
    kw3, kb3 = jax.random.split(jax.random.fold_in(key, 99))
    w3, b3 = linear(kw3, kb3, HIDDEN, OUT)

    return (w1, b1, g1, be1, m1, v1,
            w2, b2, g2, be2, m2, v2,
            w3, b3)


def reference_forward(x, params):
    """Pure-JAX f32 reference with the original (unfolded) PyTorch math."""
    (w1, b1, g1, be1, m1, v1,
     w2, b2, g2, be2, m2, v2,
     w3, b3) = params
    h = x @ w1 + b1
    h = (h - m1) * jax.lax.rsqrt(v1 + EPS) * g1 + be1
    h = jnp.maximum(h, 0.0)
    h = h @ w2 + b2
    h = (h - m2) * jax.lax.rsqrt(v2 + EPS) * g2 + be2
    h = jnp.maximum(h, 0.0)
    return h @ w3 + b3


if __name__ == "__main__":
    key = jax.random.PRNGKey(0)
    k_x, k_p = jax.random.split(key)

    B = 8
    x = jax.random.normal(k_x, (B, IN_FEATURES), jnp.float32)
    params = init_params(k_p)

    out = forward(x, params)
    out = jax.block_until_ready(out)

    ref = reference_forward(x, params)
    assert out.shape == (B, OUT), out.shape
    # bf16 MXU inputs / bf16 output store with f32 accumulation -> loose-but-safe tolerance
    assert jnp.allclose(out, ref, atol=5e-2, rtol=5e-2), "mismatch vs JAX reference"

    print("KERNEL_OK")
</pallas_src>

<mosaic_0001>
module attributes {stable_mosaic.version = 11 : i64} {
  func.func @mlp_kernel(%arg0: i32, %arg1: memref<16x2352xf32, #tpu.memory_space<vmem>>, %arg2: memref<2352x256xbf16, #tpu.memory_space<vmem>>, %arg3: memref<1x256xf32, #tpu.memory_space<vmem>>, %arg4: memref<256x256xbf16, #tpu.memory_space<vmem>>, %arg5: memref<1x256xf32, #tpu.memory_space<vmem>>, %arg6: memref<256x128xbf16, #tpu.memory_space<vmem>>, %arg7: memref<1x128xf32, #tpu.memory_space<vmem>>, %arg8: memref<16x128xbf16, #tpu.memory_space<vmem>>) attributes {dimension_semantics = [#tpu.dimension_semantics<parallel>], iteration_bounds = array<i64: 1>, scalar_prefetch = 0 : i64, scratch_operands = 0 : i64, tpu.core_type = #tpu.core_type<tc>, window_params = [{transform_indices = @transform_0, window_bounds = array<i64: 16, 2352>}, {pipeline_mode = #tpu.pipeline_mode<synchronous>, transform_indices = @transform_1, window_bounds = array<i64: 2352, 256>}, {pipeline_mode = #tpu.pipeline_mode<synchronous>, transform_indices = @transform_2, window_bounds = array<i64: 1, 256>}, {pipeline_mode = #tpu.pipeline_mode<synchronous>, transform_indices = @transform_3, window_bounds = array<i64: 256, 256>}, {pipeline_mode = #tpu.pipeline_mode<synchronous>, transform_indices = @transform_4, window_bounds = array<i64: 1, 256>}, {pipeline_mode = #tpu.pipeline_mode<synchronous>, transform_indices = @transform_5, window_bounds = array<i64: 256, 128>}, {pipeline_mode = #tpu.pipeline_mode<synchronous>, transform_indices = @transform_6, window_bounds = array<i64: 1, 128>}, {transform_indices = @transform_7, window_bounds = array<i64: 16, 128>}]} {
    %c0 = arith.constant 0 : index
    %c0_0 = arith.constant 0 : index
    %0 = vector.load %arg1[%c0, %c0_0] : memref<16x2352xf32, #tpu.memory_space<vmem>>, vector<16x2352xf32>
    %1 = arith.truncf %0 : vector<16x2352xf32> to vector<16x2352xbf16>
    %c0_1 = arith.constant 0 : index
    %c0_2 = arith.constant 0 : index
    %2 = vector.load %arg2[%c0_1, %c0_2] : memref<2352x256xbf16, #tpu.memory_space<vmem>>, vector<2352x256xbf16>
    %cst = arith.constant dense<0.000000e+00> : vector<16x256xf32>
    %3 = tpu.matmul %1, %2, %cst {dimension_numbers = #tpu.dot_dimension_numbers<[1], [0], [0], [1], [0, 0, 1, 1], [], []>} : vector<16x2352xbf16>, vector<2352x256xbf16>, vector<16x256xf32> -> vector<16x256xf32>
    %c0_3 = arith.constant 0 : index
    %c0_4 = arith.constant 0 : index
    %4 = vector.load %arg3[%c0_3, %c0_4] : memref<1x256xf32, #tpu.memory_space<vmem>>, vector<1x256xf32>
    %5 = vector.broadcast %4 : vector<1x256xf32> to vector<16x256xf32>
    %6 = arith.addf %3, %5 : vector<16x256xf32>
    %cst_5 = arith.constant 0.000000e+00 : f32
    %7 = vector.broadcast %cst_5 : f32 to vector<16x256xf32>
    %8 = arith.maximumf %6, %7 : vector<16x256xf32>
    %9 = arith.truncf %8 : vector<16x256xf32> to vector<16x256xbf16>
    %c0_6 = arith.constant 0 : index
    %c0_7 = arith.constant 0 : index
    %10 = vector.load %arg4[%c0_6, %c0_7] : memref<256x256xbf16, #tpu.memory_space<vmem>>, vector<256x256xbf16>
    %cst_8 = arith.constant dense<0.000000e+00> : vector<16x256xf32>
    %11 = tpu.matmul %9, %10, %cst_8 {dimension_numbers = #tpu.dot_dimension_numbers<[1], [0], [0], [1], [0, 0, 1, 1], [], []>} : vector<16x256xbf16>, vector<256x256xbf16>, vector<16x256xf32> -> vector<16x256xf32>
    %c0_9 = arith.constant 0 : index
    %c0_10 = arith.constant 0 : index
    %12 = vector.load %arg5[%c0_9, %c0_10] : memref<1x256xf32, #tpu.memory_space<vmem>>, vector<1x256xf32>
    %13 = vector.broadcast %12 : vector<1x256xf32> to vector<16x256xf32>
    %14 = arith.addf %11, %13 : vector<16x256xf32>
    %cst_11 = arith.constant 0.000000e+00 : f32
    %15 = vector.broadcast %cst_11 : f32 to vector<16x256xf32>
    %16 = arith.maximumf %14, %15 : vector<16x256xf32>
    %17 = arith.truncf %16 : vector<16x256xf32> to vector<16x256xbf16>
    %c0_12 = arith.constant 0 : index
    %c0_13 = arith.constant 0 : index
    %18 = vector.load %arg6[%c0_12, %c0_13] : memref<256x128xbf16, #tpu.memory_space<vmem>>, vector<256x128xbf16>
    %cst_14 = arith.constant dense<0.000000e+00> : vector<16x128xf32>
    %19 = tpu.matmul %17, %18, %cst_14 {dimension_numbers = #tpu.dot_dimension_numbers<[1], [0], [0], [1], [0, 0, 1, 1], [], []>} : vector<16x256xbf16>, vector<256x128xbf16>, vector<16x128xf32> -> vector<16x128xf32>
    %c0_15 = arith.constant 0 : index
    %c0_16 = arith.constant 0 : index
    %20 = vector.load %arg7[%c0_15, %c0_16] : memref<1x128xf32, #tpu.memory_space<vmem>>, vector<1x128xf32>
    %21 = vector.broadcast %20 : vector<1x128xf32> to vector<16x128xf32>
    %22 = arith.addf %19, %21 : vector<16x128xf32>
    %23 = arith.truncf %22 : vector<16x128xf32> to vector<16x128xbf16>
    %c0_17 = arith.constant 0 : index
    %c0_18 = arith.constant 0 : index
    %24 = vector.load %arg8[%c0_17, %c0_18] : memref<16x128xbf16, #tpu.memory_space<vmem>>, vector<16x128xbf16>
    tpu.vector_store %arg8[%c0_17, %c0_18], %23 {strides = array<i32>} : memref<16x128xbf16, #tpu.memory_space<vmem>>, vector<16x128xbf16>,
    return
  }
  func.func @transform_0(%arg0: i32) -> (i32, i32) {
    %c0_i32 = arith.constant 0 : i32
    %c0_i32_0 = arith.constant 0 : i32
    return %arg0, %c0_i32 : i32, i32
  }
  func.func @transform_1(%arg0: i32) -> (i32, i32) {
    %c0_i32 = arith.constant 0 : i32
    %c0_i32_0 = arith.constant 0 : i32
    %c0_i32_1 = arith.constant 0 : i32
    return %c0_i32, %c0_i32_0 : i32, i32
  }
  func.func @transform_2(%arg0: i32) -> (i32, i32) {
    %c0_i32 = arith.constant 0 : i32
    %c0_i32_0 = arith.constant 0 : i32
    %c0_i32_1 = arith.constant 0 : i32
    return %c0_i32, %c0_i32_0 : i32, i32
  }
  func.func @transform_3(%arg0: i32) -> (i32, i32) {
    %c0_i32 = arith.constant 0 : i32
    %c0_i32_0 = arith.constant 0 : i32
    %c0_i32_1 = arith.constant 0 : i32
    return %c0_i32, %c0_i32_0 : i32, i32
  }
  func.func @transform_4(%arg0: i32) -> (i32, i32) {
    %c0_i32 = arith.constant 0 : i32
    %c0_i32_0 = arith.constant 0 : i32
    %c0_i32_1 = arith.constant 0 : i32
    return %c0_i32, %c0_i32_0 : i32, i32
  }
  func.func @transform_5(%arg0: i32) -> (i32, i32) {
    %c0_i32 = arith.constant 0 : i32
    %c0_i32_0 = arith.constant 0 : i32
    %c0_i32_1 = arith.constant 0 : i32
    return %c0_i32, %c0_i32_0 : i32, i32
  }
  func.func @transform_6(%arg0: i32) -> (i32, i32) {
    %c0_i32 = arith.constant 0 : i32
    %c0_i32_0 = arith.constant 0 : i32
    %c0_i32_1 = arith.constant 0 : i32
    return %c0_i32, %c0_i32_0 : i32, i32
  }
  func.func @transform_7(%arg0: i32) -> (i32, i32) {
    %c0_i32 = arith.constant 0 : i32
    %c0_i32_0 = arith.constant 0 : i32
    return %arg0, %c0_i32 : i32, i32
  }
}

</mosaic_0001>

<llo_original>
// kernel: tpu_custom_call.1
$region0: #{tpu_custom_call.1}
  #allocation0 [shape = 'u32[]', space=smem, size = 0x4, offset = 0x4, fixed_abs, tag = 'smem constant byte address 0x4 - core index']
  #allocation1 [shape = 'u32[144,128]{1,0:T(1,128)}', space=vmem, size = 0x12000, scoped, tag = 'internal scratch']
  %s0 = inlined_call_operand.hbm [shape: f32[16,2352], index: 0, kind: input, shape index: {}]
  %s1 = inlined_call_operand.hbm [shape: bf16[2352,256], index: 1, kind: input, shape index: {}]
  %s2 = inlined_call_operand.hbm [shape: f32[1,256], index: 2, kind: input, shape index: {}]
  %s3 = inlined_call_operand.hbm [shape: bf16[256,256], index: 3, kind: input, shape index: {}]
  %s4 = inlined_call_operand.hbm [shape: f32[1,256], index: 4, kind: input, shape index: {}]
  %s5 = inlined_call_operand.hbm [shape: bf16[256,128], index: 5, kind: input, shape index: {}]
  %s6 = inlined_call_operand.hbm [shape: f32[1,128], index: 6, kind: input, shape index: {}]
  %s7 = inlined_call_operand.hbm [shape: bf16[16,128], index: 7, kind: output, shape index: {}]
  %s8 = sld [smem:[#allocation0]]
  $region66: #{tpu_custom_call.1} parent=0
    _
  %s10 = ssub.s32 1, %s8
  %s11 = scalar_select 0, %s10, %s8
  $region1: #{tpu_custom_call.1} parent=0
    #allocation2 [shape = 'u8[155648]{0}', space=vmem, size = 0x26000, scoped, tag = 'input window, operand 0, single buffered']
    #allocation3 [shape = 's32[1]{0}', space=sflag, size = 0x4, scoped, tag = 'scoped memory for tpu_custom_call.1']
    #allocation4 [shape = 's32[1]{0}', space=sflag, size = 0x4, scoped, tag = 'scoped memory for tpu_custom_call.1']
    #allocation5 [shape = 'u8[1204224]{0}', space=vmem, size = 0x126000, scoped, tag = 'input window, operand 1, single buffered']
    #allocation6 [shape = 's32[1]{0}', space=sflag, size = 0x4, scoped, tag = 'scoped memory for tpu_custom_call.1']
    #allocation7 [shape = 'u8[1024]{0}', space=vmem, size = 0x400, scoped, tag = 'input window, operand 2, single buffered']
    #allocation8 [shape = 'u8[131072]{0}', space=vmem, size = 0x20000, scoped, tag = 'input window, operand 3, single buffered']
    #allocation9 [shape = 's32[1]{0}', space=sflag, size = 0x4, scoped, tag = 'scoped memory for tpu_custom_call.1']
    #allocation10 [shape = 'u8[1024]{0}', space=vmem, size = 0x400, scoped, tag = 'input window, operand 4, single buffered']
    #allocation11 [shape = 'u8[65536]{0}', space=vmem, size = 0x10000, scoped, tag = 'input window, operand 5, single buffered']
    #allocation12 [shape = 's32[1]{0}', space=sflag, size = 0x4, scoped, tag = 'scoped memory for tpu_custom_call.1']
    #allocation13 [shape = 'u8[512]{0}', space=vmem, size = 0x400, scoped, tag = 'input window, operand 6, single buffered']
    #allocation14 [shape = 'u8[4096]{0}', space=vmem, size = 0x1000, scoped, tag = 'output window, operand 0, single buffered']
    %12 = vsyncpa [#allocation3], 0
    %13 = vsyncpa [#allocation6], 0
    %14 = vsyncpa [#allocation9], 0
    %15 = vsyncpa [#allocation12], 0
    %16 = vsyncpa [#allocation4], 0
    // Predicated region
    $region2: #{tpu_custom_call.1} parent=1 // pred_check
      _
    $region3: #{tpu_custom_call.1} parent=1 // pred_check_branch
      %18 = sbr.rel (0) target = $region5
    $region4: #{tpu_custom_call.1} parent=1 // pred_region
      %s20 = ssub.s32 4864, 4864
      %21 = vsyncadd [#allocation3], %s20
      %s22 = sshll.u32 [#allocation2], 4
      %s23 = int_to_ptr.vmem [resolvable:$true] %s22
      %28 = dma.hbm_to_vmem [thread:$0]  %s0, 4864, %s23, [#allocation3], 2432, 2432, 152
    $region5: #{tpu_custom_call.1} parent=1 // pred_fallthru
      _
    // Predicated region
    $region6: #{tpu_custom_call.1} parent=1 // pred_check
      _
    $region7: #{tpu_custom_call.1} parent=1 // pred_check_branch
      %30 = sbr.rel (0) target = $region9
    $region8: #{tpu_custom_call.1} parent=1 // pred_region
      %s32 = ssub.s32 37632, 37632
      %33 = vsyncadd [#allocation6], %s32
      %s34 = sshll.u32 [#allocation5], 4
      %s35 = int_to_ptr.vmem [resolvable:$true] %s34
      %40 = dma.hbm_to_vmem [thread:$0]  %s1, 37632, %s35, [#allocation6], 128, 128, 8
    $region9: #{tpu_custom_call.1} parent=1 // pred_fallthru
      _
    // Predicated region
    $region10: #{tpu_custom_call.1} parent=1 // pred_check
      _
    $region11: #{tpu_custom_call.1} parent=1 // pred_check_branch
      %42 = sbr.rel (0) target = $region13
    $region12: #{tpu_custom_call.1} parent=1 // pred_region
      %s44 = ssub.s32 32, 32
      %45 = vsyncadd [#allocation6], %s44
      %s47 = sshll.u32 [#allocation7], 4
      %s48 = int_to_ptr.vmem [resolvable:$true] %s47
      %50 = dma.hbm_to_vmem [thread:$0]  %s2, 32, %s48, [#allocation6]
    $region13: #{tpu_custom_call.1} parent=1 // pred_fallthru
      _
    // Predicated region
    $region14: #{tpu_custom_call.1} parent=1 // pred_check
      _
    $region15: #{tpu_custom_call.1} parent=1 // pred_check_branch
      %52 = sbr.rel (0) target = $region17
    $region16: #{tpu_custom_call.1} parent=1 // pred_region
      %s54 = ssub.s32 4096, 4096
      %55 = vsyncadd [#allocation9], %s54
      %s56 = sshll.u32 [#allocation8], 4
      %s57 = int_to_ptr.vmem [resolvable:$true] %s56
      %62 = dma.hbm_to_vmem [thread:$0]  %s3, 4096, %s57, [#allocation9], 128, 128, 8
    $region17: #{tpu_custom_call.1} parent=1 // pred_fallthru
      _
    // Predicated region
    $region18: #{tpu_custom_call.1} parent=1 // pred_check
      _
    $region19: #{tpu_custom_call.1} parent=1 // pred_check_branch
      %64 = sbr.rel (0) target = $region21
    $region20: #{tpu_custom_call.1} parent=1 // pred_region
      %s66 = ssub.s32 32, 32
      %67 = vsyncadd [#allocation9], %s66
      %s69 = sshll.u32 [#allocation10], 4
      %s70 = int_to_ptr.vmem [resolvable:$true] %s69
      %72 = dma.hbm_to_vmem [thread:$0]  %s4, 32, %s70, [#allocation9]
    $region21: #{tpu_custom_call.1} parent=1 // pred_fallthru
      _
    // Predicated region
    $region22: #{tpu_custom_call.1} parent=1 // pred_check
      _
    $region23: #{tpu_custom_call.1} parent=1 // pred_check_branch
      %74 = sbr.rel (0) target = $region25
    $region24: #{tpu_custom_call.1} parent=1 // pred_region
      %s76 = ssub.s32 2048, 2048
      %77 = vsyncadd [#allocation12], %s76
      %s78 = sshll.u32 [#allocation11], 4
      %s79 = int_to_ptr.vmem [resolvable:$true] %s78
      %84 = dma.hbm_to_vmem [thread:$0]  %s5, 2048, %s79, [#allocation12], 64, 64, 4
    $region25: #{tpu_custom_call.1} parent=1 // pred_fallthru
      _
    // Predicated region
    $region26: #{tpu_custom_call.1} parent=1 // pred_check
      _
    $region27: #{tpu_custom_call.1} parent=1 // pred_check_branch
      %86 = sbr.rel (0) target = $region29
    $region28: #{tpu_custom_call.1} parent=1 // pred_region
      %s88 = ssub.s32 16, 16
      %89 = vsyncadd [#allocation12], %s88
      %s91 = sshll.u32 [#allocation13], 4
      %s92 = int_to_ptr.vmem [resolvable:$true] %s91
      %94 = dma.hbm_to_vmem [thread:$0]  %s6, 16, %s92, [#allocation12]
    $region29: #{tpu_custom_call.1} parent=1 // pred_fallthru
      _
    // Predicated region
    $region30: #{tpu_custom_call.1} parent=1 // pred_check
      _
    $region31: #{tpu_custom_call.1} parent=1 // pred_check_branch
      %96 = sbr.rel (0) target = $region33
    $region32: #{tpu_custom_call.1} parent=1 // pred_region
      %97 = dma.done [#allocation3], 4864
    $region33: #{tpu_custom_call.1} parent=1 // pred_fallthru
      _
    // Predicated region
    $region34: #{tpu_custom_call.1} parent=1 // pred_check
      _
    $region35: #{tpu_custom_call.1} parent=1 // pred_check_branch
      %99 = sbr.rel (0) target = $region37
    $region36: #{tpu_custom_call.1} parent=1 // pred_region
      %100 = dma.done [#allocation6], 37632
    $region37: #{tpu_custom_call.1} parent=1 // pred_fallthru
      _
    // Predicated region
    $region38: #{tpu_custom_call.1} parent=1 // pred_check
      _
    $region39: #{tpu_custom_call.1} parent=1 // pred_check_branch
      %102 = sbr.rel (0) target = $region41
    $region40: #{tpu_custom_call.1} parent=1 // pred_region
      %103 = dma.done [#allocation6], 32
    $region41: #{tpu_custom_call.1} parent=1 // pred_fallthru
      _
    // Predicated region
    $region42: #{tpu_custom_call.1} parent=1 // pred_check
      _
    $region43: #{tpu_custom_call.1} parent=1 // pred_check_branch
      %105 = sbr.rel (0) target = $region45
    $region44: #{tpu_custom_call.1} parent=1 // pred_region
      %106 = dma.done [#allocation9], 4096
    $region45: #{tpu_custom_call.1} parent=1 // pred_fallthru
      _
    // Predicated region
    $region46: #{tpu_custom_call.1} parent=1 // pred_check
      _
    $region47: #{tpu_custom_call.1} parent=1 // pred_check_branch
      %108 = sbr.rel (0) target = $region49
    $region48: #{tpu_custom_call.1} parent=1 // pred_region
      %109 = dma.done [#allocation9], 32
    $region49: #{tpu_custom_call.1} parent=1 // pred_fallthru
      _
    // Predicated region
    $region50: #{tpu_custom_call.1} parent=1 // pred_check
      _
    $region51: #{tpu_custom_call.1} parent=1 // pred_check_branch
      %111 = sbr.rel (0) target = $region53
    $region52: #{tpu_custom_call.1} parent=1 // pred_region
      %112 = dma.done [#allocation12], 2048
    $region53: #{tpu_custom_call.1} parent=1 // pred_fallthru
      _
    // Predicated region
    $region54: #{tpu_custom_call.1} parent=1 // pred_check
      _
    $region55: #{tpu_custom_call.1} parent=1 // pred_check_branch
      %114 = sbr.rel (0) target = $region57
    $region56: #{tpu_custom_call.1} parent=1 // pred_region
      %115 = dma.done [#allocation12], 16
    $region57: #{tpu_custom_call.1} parent=1 // pred_fallthru
      _
    %v117 = vld [vmem:[#allocation2] sm:$0xff]
    %v118 = vld [vmem:[#allocation2 + $0x8] sm:$0xff]
    %v119 = vld [vmem:[#allocation2 + $0x10] sm:$0xff]
    %v120 = vld [vmem:[#allocation2 + $0x18] sm:$0xff]
    %v121 = vld [vmem:[#allocation2 + $0x20] sm:$0xff]
    %v122 = vld [vmem:[#allocation2 + $0x28] sm:$0xff]
    %v123 = vld [vmem:[#allocation2 + $0x30] sm:$0xff]
    %v124 = vld [vmem:[#allocation2 + $0x38] sm:$0xff]
    %v125 = vld [vmem:[#allocation2 + $0x40] sm:$0xff]
    %v126 = vld [vmem:[#allocation2 + $0x48] sm:$0xff]
    %v127 = vld [vmem:[#allocation2 + $0x50] sm:$0xff]
    %v128 = vld [vmem:[#allocation2 + $0x58] sm:$0xff]
    %v129 = vld [vmem:[#allocation2 + $0x60] sm:$0xff]
    %v130 = vld [vmem:[#allocation2 + $0x68] sm:$0xff]
    %v131 = vld [vmem:[#allocation2 + $0x70] sm:$0xff]
    %v132 = vld [vmem:[#allocation2 + $0x78] sm:$0xff]
    %v133 = vld [vmem:[#allocation2 + $0x80] sm:$0xff]
    %v134 = vld [vmem:[#allocation2 + $0x88] sm:$0xff]
    %v135 = vld [vmem:[#allocation2 + $0x90] sm:$0xff]
    %v136 = vld [vmem:[#allocation2 + $0x98] sm:$0xff]
    %v137 = vld [vmem:[#allocation2 + $0xa0] sm:$0xff]
    %v138 = vld [vmem:[#allocation2 + $0xa8] sm:$0xff]
    %v139 = vld [vmem:[#allocation2 + $0xb0] sm:$0xff]
    %v140 = vld [vmem:[#allocation2 + $0xb8] sm:$0xff]
    %v141 = vld [vmem:[#allocation2 + $0xc0] sm:$0xff]
    %v142 = vld [vmem:[#allocation2 + $0xc8] sm:$0xff]
    %v143 = vld [vmem:[#allocation2 + $0xd0] sm:$0xff]
    %v144 = vld [vmem:[#allocation2 + $0xd8] sm:$0xff]
    %v145 = vld [vmem:[#allocation2 + $0xe0] sm:$0xff]
    %v146 = vld [vmem:[#allocation2 + $0xe8] sm:$0xff]
    %v147 = vld [vmem:[#allocation2 + $0xf0] sm:$0xff]
    %v148 = vld [vmem:[#allocation2 + $0xf8] sm:$0xff]
    %v149 = vld [vmem:[#allocation2 + $0x100] sm:$0xff]
    %v150 = vld [vmem:[#allocation2 + $0x108] sm:$0xff]
    %v151 = vld [vmem:[#allocation2 + $0x110] sm:$0xff]
    %v152 = vld [vmem:[#allocation2 + $0x118] sm:$0xff]
    %v153 = vld [vmem:[#allocation2 + $0x120] sm:$0xff]
    %v154 = vld [vmem:[#allocation2 + $0x128] sm:$0xff]
    %v155 = vpack.c.bf16 %v136, %v117
    %v156 = vpack.c.bf16 %v137, %v118
    %v157 = vpack.c.bf16 %v138, %v119
    %v158 = vpack.c.bf16 %v139, %v120
    %v159 = vpack.c.bf16 %v140, %v121
    %v160 = vpack.c.bf16 %v141, %v122
    %v161 = vpack.c.bf16 %v142, %v123
    %v162 = vpack.c.bf16 %v143, %v124
    %v163 = vpack.c.bf16 %v144, %v125
    %v164 = vpack.c.bf16 %v145, %v126
    %v165 = vpack.c.bf16 %v146, %v127
    %v166 = vpack.c.bf16 %v147, %v128
    %v167 = vpack.c.bf16 %v148, %v129
    %v168 = vpack.c.bf16 %v149, %v130
    %v169 = vpack.c.bf16 %v150, %v131
    %v170 = vpack.c.bf16 %v151, %v132
    %v171 = vpack.c.bf16 %v152, %v133
    %v172 = vpack.c.bf16 %v153, %v134
    %v173 = vpack.c.bf16 %v154, %v135
    %v174 = vld [vmem:[#allocation5] sm:$0xff]
    %v175 = vld [vmem:[#allocation5 + $0x8] sm:$0xff]
    %v176 = vld [vmem:[#allocation5 + $0x10] sm:$0xff]
    %v177 = vld [vmem:[#allocation5 + $0x18] sm:$0xff]
    %v178 = vld [vmem:[#allocation5 + $0x20] sm:$0xff]
    %v179 = vld [vmem:[#allocation5 + $0x28] sm:$0xff]
    %v180 = vld [vmem:[#allocation5 + $0x30] sm:$0xff]
    %v181 = vld [vmem:[#allocation5 + $0x38] sm:$0xff]
    %v182 = vld [vmem:[#allocation5 + $0x40] sm:$0xff]
    %v183 = vld [vmem:[#allocation5 + $0x48] sm:$0xff]
    %v184 = vld [vmem:[#allocation5 + $0x50] sm:$0xff]
    %v185 = vld [vmem:[#allocation5 + $0x58] sm:$0xff]
    %v186 = vld [vmem:[#allocation5 + $0x60] sm:$0xff]
    %v187 = vld [vmem:[#allocation5 + $0x68] sm:$0xff]
    %v188 = vld [vmem:[#allocation5 + $0x70] sm:$0xff]
    %v189 = vld [vmem:[#allocation5 + $0x78] sm:$0xff]
    %v190 = vld [vmem:[#allocation5 + $0x80] sm:$0xff]
    %v191 = vld [vmem:[#allocation5 + $0x88] sm:$0xff]
    %v192 = vld [vmem:[#allocation5 + $0x90] sm:$0xff]
    %v193 = vld [vmem:[#allocation5 + $0x98] sm:$0xff]
    %v194 = vld [vmem:[#allocation5 + $0xa0] sm:$0xff]
    %v195 = vld [vmem:[#allocation5 + $0xa8] sm:$0xff]
    %v196 = vld [vmem:[#allocation5 + $0xb0] sm:$0xff]
    %v197 = vld [vmem:[#allocation5 + $0xb8] sm:$0xff]
    %v198 = vld [vmem:[#allocation5 + $0xc0] sm:$0xff]
    %v199 = vld [vmem:[#allocation5 + $0xc8] sm:$0xff]
    %v200 = vld [vmem:[#allocation5 + $0xd0] sm:$0xff]
    %v201 = vld [vmem:[#allocation5 + $0xd8] sm:$0xff]
    %v202 = vld [vmem:[#allocation5 + $0xe0] sm:$0xff]
    %v203 = vld [vmem:[#allocation5 + $0xe8] sm:$0xff]
    %v204 = vld [vmem:[#allocation5 + $0xf0] sm:$0xff]
    %v205 = vld [vmem:[#allocation5 + $0xf8] sm:$0xff]
    %v206 = vld [vmem:[#allocation5 + $0x100] sm:$0xff]
    %v207 = vld [vmem:[#allocation5 + $0x108] sm:$0xff]
    %v208 = vld [vmem:[#allocation5 + $0x110] sm:$0xff]
    %v209 = vld [vmem:[#allocation5 + $0x118] sm:$0xff]
    %v210 = vld [vmem:[#allocation5 + $0x120] sm:$0xff]
    %v211 = vld [vmem:[#allocation5 + $0x128] sm:$0xff]
    %v212 = vld [vmem:[#allocation5 + $0x130] sm:$0xff]
    %v213 = vld [vmem:[#allocation5 + $0x138] sm:$0xff]
    %v214 = vld [vmem:[#allocation5 + $0x140] sm:$0xff]
    %v215 = vld [vmem:[#allocation5 + $0x148] sm:$0xff]
    %v216 = vld [vmem:[#allocation5 + $0x150] sm:$0xff]
    %v217 = vld [vmem:[#allocation5 + $0x158] sm:$0xff]
    %v218 = vld [vmem:[#allocation5 + $0x160] sm:$0xff]
    %v219 = vld [vmem:[#allocation5 + $0x168] sm:$0xff]
    %v220 = vld [vmem:[#allocation5 + $0x170] sm:$0xff]
    %v221 = vld [vmem:[#allocation5 + $0x178] sm:$0xff]
    %v222 = vld [vmem:[#allocation5 + $0x180] sm:$0xff]
    %v223 = vld [vmem:[#allocation5 + $0x188] sm:$0xff]
    %v224 = vld [vmem:[#allocation5 + $0x190] sm:$0xff]
    %v225 = vld [vmem:[#allocation5 + $0x198] sm:$0xff]
    %v226 = vld [vmem:[#allocation5 + $0x1a0] sm:$0xff]
    %v227 = vld [vmem:[#allocation5 + $0x1a8] sm:$0xff]
    %v228 = vld [vmem:[#allocation5 + $0x1b0] sm:$0xff]
    %v229 = vld [vmem:[#allocation5 + $0x1b8] sm:$0xff]
    %v230 = vld [vmem:[#allocation5 + $0x1c0] sm:$0xff]
    %v231 = vld [vmem:[#allocation5 + $0x1c8] sm:$0xff]
    %v232 = vld [vmem:[#allocation5 + $0x1d0] sm:$0xff]
    %v233 = vld [vmem:[#allocation5 + $0x1d8] sm:$0xff]
    %v234 = vld [vmem:[#allocation5 + $0x1e0] sm:$0xff]
    %v235 = vld [vmem:[#allocation5 + $0x1e8] sm:$0xff]
    %v236 = vld [vmem:[#allocation5 + $0x1f0] sm:$0xff]
    %v237 = vld [vmem:[#allocation5 + $0x1f8] sm:$0xff]
    %v238 = vld [vmem:[#allocation5 + $0x200] sm:$0xff]
    %v239 = vld [vmem:[#allocation5 + $0x208] sm:$0xff]
    %v240 = vld [vmem:[#allocation5 + $0x210] sm:$0xff]
    %v241 = vld [vmem:[#allocation5 + $0x218] sm:$0xff]
    %v242 = vld [vmem:[#allocation5 + $0x220] sm:$0xff]
    %v243 = vld [vmem:[#allocation5 + $0x228] sm:$0xff]
    %v244 = vld [vmem:[#allocation5 + $0x230] sm:$0xff]
    %v245 = vld [vmem:[#allocation5 + $0x238] sm:$0xff]
    %v246 = vld [vmem:[#allocation5 + $0x240] sm:$0xff]
    %v247 = vld [vmem:[#allocation5 + $0x248] sm:$0xff]
    %v248 = vld [vmem:[#allocation5 + $0x250] sm:$0xff]
    %v249 = vld [vmem:[#allocation5 + $0x258] sm:$0xff]
    %v250 = vld [vmem:[#allocation5 + $0x260] sm:$0xff]
    %v251 = vld [vmem:[#allocation5 + $0x268] sm:$0xff]
    %v252 = vld [vmem:[#allocation5 + $0x270] sm:$0xff]
    %v253 = vld [vmem:[#allocation5 + $0x278] sm:$0xff]
    %v254 = vld [vmem:[#allocation5 + $0x280] sm:$0xff]
    %v255 = vld [vmem:[#allocation5 + $0x288] sm:$0xff]
    %v256 = vld [vmem:[#allocation5 + $0x290] sm:$0xff]
    %v257 = vld [vmem:[#allocation5 + $0x298] sm:$0xff]
    %v258 = vld [vmem:[#allocation5 + $0x2a0] sm:$0xff]
    %v259 = vld [vmem:[#allocation5 + $0x2a8] sm:$0xff]
    %v260 = vld [vmem:[#allocation5 + $0x2b0] sm:$0xff]
    %v261 = vld [vmem:[#allocation5 + $0x2b8] sm:$0xff]
    %v262 = vld [vmem:[#allocation5 + $0x2c0] sm:$0xff]
    %v263 = vld [vmem:[#allocation5 + $0x2c8] sm:$0xff]
    %v264 = vld [vmem:[#allocation5 + $0x2d0] sm:$0xff]
    %v265 = vld [vmem:[#allocation5 + $0x2d8] sm:$0xff]
    %v266 = vld [vmem:[#allocation5 + $0x2e0] sm:$0xff]
    %v267 = vld [vmem:[#allocation5 + $0x2e8] sm:$0xff]
    %v268 = vld [vmem:[#allocation5 + $0x2f0] sm:$0xff]
    %v269 = vld [vmem:[#allocation5 + $0x2f8] sm:$0xff]
    %v270 = vld [vmem:[#allocation5 + $0x300] sm:$0xff]
    %v271 = vld [vmem:[#allocation5 + $0x308] sm:$0xff]
    %v272 = vld [vmem:[#allocation5 + $0x310] sm:$0xff]
    %v273 = vld [vmem:[#allocation5 + $0x318] sm:$0xff]
    %v274 = vld [vmem:[#allocation5 + $0x320] sm:$0xff]
    %v275 = vld [vmem:[#allocation5 + $0x328] sm:$0xff]
    %v276 = vld [vmem:[#allocation5 + $0x330] sm:$0xff]
    %v277 = vld [vmem:[#allocation5 + $0x338] sm:$0xff]
    %v278 = vld [vmem:[#allocation5 + $0x340] sm:$0xff]
    %v279 = vld [vmem:[#allocation5 + $0x348] sm:$0xff]
    %v280 = vld [vmem:[#allocation5 + $0x350] sm:$0xff]
    %v281 = vld [vmem:[#allocation5 + $0x358] sm:$0xff]
    %v282 = vld [vmem:[#allocation5 + $0x360] sm:$0xff]
    %v283 = vld [vmem:[#allocation5 + $0x368] sm:$0xff]
    %v284 = vld [vmem:[#allocation5 + $0x370] sm:$0xff]
    %v285 = vld [vmem:[#allocation5 + $0x378] sm:$0xff]
    %v286 = vld [vmem:[#allocation5 + $0x380] sm:$0xff]
    %v287 = vld [vmem:[#allocation5 + $0x388] sm:$0xff]
    %v288 = vld [vmem:[#allocation5 + $0x390] sm:$0xff]
    %v289 = vld [vmem:[#allocation5 + $0x398] sm:$0xff]
    %v290 = vld [vmem:[#allocation5 + $0x3a0] sm:$0xff]
    %v291 = vld [vmem:[#allocation5 + $0x3a8] sm:$0xff]
    %v292 = vld [vmem:[#allocation5 + $0x3b0] sm:$0xff]
    %v293 = vld [vmem:[#allocation5 + $0x3b8] sm:$0xff]
    %v294 = vld [vmem:[#allocation5 + $0x3c0] sm:$0xff]
    %v295 = vld [vmem:[#allocation5 + $0x3c8] sm:$0xff]
    %v296 = vld [vmem:[#allocation5 + $0x3d0] sm:$0xff]
    %v297 = vld [vmem:[#allocation5 + $0x3d8] sm:$0xff]
    %v298 = vld [vmem:[#allocation5 + $0x3e0] sm:$0xff]
    %v299 = vld [vmem:[#allocation5 + $0x3e8] sm:$0xff]
    %v300 = vld [vmem:[#allocation5 + $0x3f0] sm:$0xff]
    %v301 = vld [vmem:[#allocation5 + $0x3f8] sm:$0xff]
    %v302 = vld [vmem:[#allocation5 + $0x400] sm:$0xff]
    %v303 = vld [vmem:[#allocation5 + $0x408] sm:$0xff]
    %v304 = vld [vmem:[#allocation5 + $0x410] sm:$0xff]
    %v305 = vld [vmem:[#allocation5 + $0x418] sm:$0xff]
    %v306 = vld [vmem:[#allocation5 + $0x420] sm:$0xff]
    %v307 = vld [vmem:[#allocation5 + $0x428] sm:$0xff]
    %v308 = vld [vmem:[#allocation5 + $0x430] sm:$0xff]
    %v309 = vld [vmem:[#allocation5 + $0x438] sm:$0xff]
    %v310 = vld [vmem:[#allocation5 + $0x440] sm:$0xff]
    %v311 = vld [vmem:[#allocation5 + $0x448] sm:$0xff]
    %v312 = vld [vmem:[#allocation5 + $0x450] sm:$0xff]
    %v313 = vld [vmem:[#allocation5 + $0x458] sm:$0xff]
    %v314 = vld [vmem:[#allocation5 + $0x460] sm:$0xff]
    %v315 = vld [vmem:[#allocation5 + $0x468] sm:$0xff]
    %v316 = vld [vmem:[#allocation5 + $0x470] sm:$0xff]
    %v317 = vld [vmem:[#allocation5 + $0x478] sm:$0xff]
    %v318 = vld [vmem:[#allocation5 + $0x480] sm:$0xff]
    %v319 = vld [vmem:[#allocation5 + $0x488] sm:$0xff]
    %v320 = vld [vmem:[#allocation5 + $0x490] sm:$0xff]
    %v321 = vld [vmem:[#allocation5 + $0x498] sm:$0xff]
    %v322 = vld [vmem:[#allocation5 + $0x4a0] sm:$0xff]
    %v323 = vld [vmem:[#allocation5 + $0x4a8] sm:$0xff]
    %v324 = vld [vmem:[#allocation5 + $0x4b0] sm:$0xff]
    %v325 = vld [vmem:[#allocation5 + $0x4b8] sm:$0xff]
    %v326 = vld [vmem:[#allocation5 + $0x4c0] sm:$0xff]
    %v327 = vld [vmem:[#allocation5 + $0x4c8] sm:$0xff]
    %v328 = vld [vmem:[#allocation5 + $0x4d0] sm:$0xff]
    %v329 = vld [vmem:[#allocation5 + $0x4d8] sm:$0xff]
    %v330 = vld [vmem:[#allocation5 + $0x4e0] sm:$0xff]
    %v331 = vld [vmem:[#allocation5 + $0x4e8] sm:$0xff]
    %v332 = vld [vmem:[#allocation5 + $0x4f0] sm:$0xff]
    %v333 = vld [vmem:[#allocation5 + $0x4f8] sm:$0xff]
    %v334 = vld [vmem:[#allocation5 + $0x500] sm:$0xff]
    %v335 = vld [vmem:[#allocation5 + $0x508] sm:$0xff]
    %v336 = vld [vmem:[#allocation5 + $0x510] sm:$0xff]
    %v337 = vld [vmem:[#allocation5 + $0x518] sm:$0xff]
    %v338 = vld [vmem:[#allocation5 + $0x520] sm:$0xff]
    %v339 = vld [vmem:[#allocation5 + $0x528] sm:$0xff]
    %v340 = vld [vmem:[#allocation5 + $0x530] sm:$0xff]
    %v341 = vld [vmem:[#allocation5 + $0x538] sm:$0xff]
    %v342 = vld [vmem:[#allocation5 + $0x540] sm:$0xff]
    %v343 = vld [vmem:[#allocation5 + $0x548] sm:$0xff]
    %v344 = vld [vmem:[#allocation5 + $0x550] sm:$0xff]
    %v345 = vld [vmem:[#allocation5 + $0x558] sm:$0xff]
    %v346 = vld [vmem:[#allocation5 + $0x560] sm:$0xff]
    %v347 = vld [vmem:[#allocation5 + $0x568] sm:$0xff]
    %v348 = vld [vmem:[#allocation5 + $0x570] sm:$0xff]
    %v349 = vld [vmem:[#allocation5 + $0x578] sm:$0xff]
    %v350 = vld [vmem:[#allocation5 + $0x580] sm:$0xff]
    %v351 = vld [vmem:[#allocation5 + $0x588] sm:$0xff]
    %v352 = vld [vmem:[#allocation5 + $0x590] sm:$0xff]
    %v353 = vld [vmem:[#allocation5 + $0x598] sm:$0xff]
    %v354 = vld [vmem:[#allocation5 + $0x5a0] sm:$0xff]
    %v355 = vld [vmem:[#allocation5 + $0x5a8] sm:$0xff]
    %v356 = vld [vmem:[#allocation5 + $0x5b0] sm:$0xff]
    %v357 = vld [vmem:[#allocation5 + $0x5b8] sm:$0xff]
    %v358 = vld [vmem:[#allocation5 + $0x5c0] sm:$0xff]
    %v359 = vld [vmem:[#allocation5 + $0x5c8] sm:$0xff]
    %v360 = vld [vmem:[#allocation5 + $0x5d0] sm:$0xff]
    %v361 = vld [vmem:[#allocation5 + $0x5d8] sm:$0xff]
    %v362 = vld [vmem:[#allocation5 + $0x5e0] sm:$0xff]
    %v363 = vld [vmem:[#allocation5 + $0x5e8] sm:$0xff]
    %v364 = vld [vmem:[#allocation5 + $0x5f0] sm:$0xff]
    %v365 = vld [vmem:[#allocation5 + $0x5f8] sm:$0xff]
    %v366 = vld [vmem:[#allocation5 + $0x600] sm:$0xff]
    %v367 = vld [vmem:[#allocation5 + $0x608] sm:$0xff]
    %v368 = vld [vmem:[#allocation5 + $0x610] sm:$0xff]
    %v369 = vld [vmem:[#allocation5 + $0x618] sm:$0xff]
    %v370 = vld [vmem:[#allocation5 + $0x620] sm:$0xff]
    %v371 = vld [vmem:[#allocation5 + $0x628] sm:$0xff]
    %v372 = vld [vmem:[#allocation5 + $0x630] sm:$0xff]
    %v373 = vld [vmem:[#allocation5 + $0x638] sm:$0xff]
    %v374 = vld [vmem:[#allocation5 + $0x640] sm:$0xff]
    %v375 = vld [vmem:[#allocation5 + $0x648] sm:$0xff]
    %v376 = vld [vmem:[#allocation5 + $0x650] sm:$0xff]
    %v377 = vld [vmem:[#allocation5 + $0x658] sm:$0xff]
    %v378 = vld [vmem:[#allocation5 + $0x660] sm:$0xff]
    %v379 = vld [vmem:[#allocation5 + $0x668] sm:$0xff]
    %v380 = vld [vmem:[#allocation5 + $0x670] sm:$0xff]
    %v381 = vld [vmem:[#allocation5 + $0x678] sm:$0xff]
    %v382 = vld [vmem:[#allocation5 + $0x680] sm:$0xff]
    %v383 = vld [vmem:[#allocation5 + $0x688] sm:$0xff]
    %v384 = vld [vmem:[#allocation5 + $0x690] sm:$0xff]
    %v385 = vld [vmem:[#allocation5 + $0x698] sm:$0xff]
    %v386 = vld [vmem:[#allocation5 + $0x6a0] sm:$0xff]
    %v387 = vld [vmem:[#allocation5 + $0x6a8] sm:$0xff]
    %v388 = vld [vmem:[#allocation5 + $0x6b0] sm:$0xff]
    %v389 = vld [vmem:[#allocation5 + $0x6b8] sm:$0xff]
    %v390 = vld [vmem:[#allocation5 + $0x6c0] sm:$0xff]
    %v391 = vld [vmem:[#allocation5 + $0x6c8] sm:$0xff]
    %v392 = vld [vmem:[#allocation5 + $0x6d0] sm:$0xff]
    %v393 = vld [vmem:[#allocation5 + $0x6d8] sm:$0xff]
    %v394 = vld [vmem:[#allocation5 + $0x6e0] sm:$0xff]
    %v395 = vld [vmem:[#allocation5 + $0x6e8] sm:$0xff]
    %v396 = vld [vmem:[#allocation5 + $0x6f0] sm:$0xff]
    %v397 = vld [vmem:[#allocation5 + $0x6f8] sm:$0xff]
    %v398 = vld [vmem:[#allocation5 + $0x700] sm:$0xff]
    %v399 = vld [vmem:[#allocation5 + $0x708] sm:$0xff]
    %v400 = vld [vmem:[#allocation5 + $0x710] sm:$0xff]
    %v401 = vld [vmem:[#allocation5 + $0x718] sm:$0xff]
    %v402 = vld [vmem:[#allocation5 + $0x720] sm:$0xff]
    %v403 = vld [vmem:[#allocation5 + $0x728] sm:$0xff]
    %v404 = vld [vmem:[#allocation5 + $0x730] sm:$0xff]
    %v405 = vld [vmem:[#allocation5 + $0x738] sm:$0xff]
    %v406 = vld [vmem:[#allocation5 + $0x740] sm:$0xff]
    %v407 = vld [vmem:[#allocation5 + $0x748] sm:$0xff]
    %v408 = vld [vmem:[#allocation5 + $0x750] sm:$0xff]
    %v409 = vld [vmem:[#allocation5 + $0x758] sm:$0xff]
    %v410 = vld [vmem:[#allocation5 + $0x760] sm:$0xff]
    %v411 = vld [vmem:[#allocation5 + $0x768] sm:$0xff]
    %v412 = vld [vmem:[#allocation5 + $0x770] sm:$0xff]
    %v413 = vld [vmem:[#allocation5 + $0x778] sm:$0xff]
    %v414 = vld [vmem:[#allocation5 + $0x780] sm:$0xff]
    %v415 = vld [vmem:[#allocation5 + $0x788] sm:$0xff]
    %v416 = vld [vmem:[#allocation5 + $0x790] sm:$0xff]
    %v417 = vld [vmem:[#allocation5 + $0x798] sm:$0xff]
    %v418 = vld [vmem:[#allocation5 + $0x7a0] sm:$0xff]
    %v419 = vld [vmem:[#allocation5 + $0x7a8] sm:$0xff]
    %v420 = vld [vmem:[#allocation5 + $0x7b0] sm:$0xff]
    %v421 = vld [vmem:[#allocation5 + $0x7b8] sm:$0xff]
    %v422 = vld [vmem:[#allocation5 + $0x7c0] sm:$0xff]
    %v423 = vld [vmem:[#allocation5 + $0x7c8] sm:$0xff]
    %v424 = vld [vmem:[#allocation5 + $0x7d0] sm:$0xff]
    %v425 = vld [vmem:[#allocation5 + $0x7d8] sm:$0xff]
    %v426 = vld [vmem:[#allocation5 + $0x7e0] sm:$0xff]
    %v427 = vld [vmem:[#allocation5 + $0x7e8] sm:$0xff]
    %v428 = vld [vmem:[#allocation5 + $0x7f0] sm:$0xff]
    %v429 = vld [vmem:[#allocation5 + $0x7f8] sm:$0xff]
    %v430 = vld [vmem:[#allocation5 + $0x800] sm:$0xff]
    %v431 = vld [vmem:[#allocation5 + $0x808] sm:$0xff]
    %v432 = vld [vmem:[#allocation5 + $0x810] sm:$0xff]
    %v433 = vld [vmem:[#allocation5 + $0x818] sm:$0xff]
    %v434 = vld [vmem:[#allocation5 + $0x820] sm:$0xff]
    %v435 = vld [vmem:[#allocation5 + $0x828] sm:$0xff]
    %v436 = vld [vmem:[#allocation5 + $0x830] sm:$0xff]
    %v437 = vld [vmem:[#allocation5 + $0x838] sm:$0xff]
    %v438 = vld [vmem:[#allocation5 + $0x840] sm:$0xff]
    %v439 = vld [vmem:[#allocation5 + $0x848] sm:$0xff]
    %v440 = vld [vmem:[#allocation5 + $0x850] sm:$0xff]
    %v441 = vld [vmem:[#allocation5 + $0x858] sm:$0xff]
    %v442 = vld [vmem:[#allocation5 + $0x860] sm:$0xff]
    %v443 = vld [vmem:[#allocation5 + $0x868] sm:$0xff]
    %v444 = vld [vmem:[#allocation5 + $0x870] sm:$0xff]
    %v445 = vld [vmem:[#allocation5 + $0x878] sm:$0xff]
    %v446 = vld [vmem:[#allocation5 + $0x880] sm:$0xff]
    %v447 = vld [vmem:[#allocation5 + $0x888] sm:$0xff]
    %v448 = vld [vmem:[#allocation5 + $0x890] sm:$0xff]
    %v449 = vld [vmem:[#allocation5 + $0x898] sm:$0xff]
    %v450 = vld [vmem:[#allocation5 + $0x8a0] sm:$0xff]
    %v451 = vld [vmem:[#allocation5 + $0x8a8] sm:$0xff]
    %v452 = vld [vmem:[#allocation5 + $0x8b0] sm:$0xff]
    %v453 = vld [vmem:[#allocation5 + $0x8b8] sm:$0xff]
    %v454 = vld [vmem:[#allocation5 + $0x8c0] sm:$0xff]
    %v455 = vld [vmem:[#allocation5 + $0x8c8] sm:$0xff]
    %v456 = vld [vmem:[#allocation5 + $0x8d0] sm:$0xff]
    %v457 = vld [vmem:[#allocation5 + $0x8d8] sm:$0xff]
    %v458 = vld [vmem:[#allocation5 + $0x8e0] sm:$0xff]
    %v459 = vld [vmem:[#allocation5 + $0x8e8] sm:$0xff]
    %v460 = vld [vmem:[#allocation5 + $0x8f0] sm:$0xff]
    %v461 = vld [vmem:[#allocation5 + $0x8f8] sm:$0xff]
    %v462 = vld [vmem:[#allocation5 + $0x900] sm:$0xff]
    %v463 = vld [vmem:[#allocation5 + $0x908] sm:$0xff]
    %v464 = vld [vmem:[#allocation5 + $0x910] sm:$0xff]
    %v465 = vld [vmem:[#allocation5 + $0x918] sm:$0xff]
    %v466 = vld [vmem:[#allocation5 + $0x920] sm:$0xff]
    %v467 = vld [vmem:[#allocation5 + $0x928] sm:$0xff]
    %v468 = vld [vmem:[#allocation7] sm:$0x3]
    %v470 = vlaneseq
    %v471 = vshrl.u32 %v470, 7
    %v472 = vsub.s32 0, %v471
    %v473 = vrot.slane %v468, %v472
    %v474 = vlaneseq
    %v475 = vshrl.u32 %v474, 7
    %v476 = vsub.s32 1, %v475
    %v477 = vrot.slane %v468, %v476
    %v774 = vunpack.c.l.b16 %v174
    %v775 = vunpack.c.h.b16 %v174
    %v776 = vunpack.c.l.b16 %v175
    %v777 = vunpack.c.h.b16 %v175
    %v778 = vunpack.c.l.b16 %v176
    %v779 = vunpack.c.h.b16 %v176
    %v780 = vunpack.c.l.b16 %v177
    %v781 = vunpack.c.h.b16 %v177
    %v782 = vunpack.c.l.b16 %v178
    %v783 = vunpack.c.h.b16 %v178
    %v784 = vunpack.c.l.b16 %v179
    %v785 = vunpack.c.h.b16 %v179
    %v786 = vunpack.c.l.b16 %v180
    %v787 = vunpack.c.h.b16 %v180
    %v788 = vunpack.c.l.b16 %v181
    %v789 = vunpack.c.h.b16 %v181
    %v790 = vunpack.c.l.b16 %v182
    %v791 = vunpack.c.h.b16 %v182
    %v792 = vunpack.c.l.b16 %v183
    %v793 = vunpack.c.h.b16 %v183
    %v794 = vunpack.c.l.b16 %v184
    %v795 = vunpack.c.h.b16 %v184
    %v796 = vunpack.c.l.b16 %v185
    %v797 = vunpack.c.h.b16 %v185
    %v798 = vunpack.c.l.b16 %v186
    %v799 = vunpack.c.h.b16 %v186
    %v800 = vunpack.c.l.b16 %v187
    %v801 = vunpack.c.h.b16 %v187
    %v802 = vunpack.c.l.b16 %v188
    %v803 = vunpack.c.h.b16 %v188
    %v804 = vunpack.c.l.b16 %v189
    %v805 = vunpack.c.h.b16 %v189
    %v806 = vunpack.c.l.b16 %v190
    %v807 = vunpack.c.h.b16 %v190
    %v808 = vunpack.c.l.b16 %v191
    %v809 = vunpack.c.h.b16 %v191
    %v810 = vunpack.c.l.b16 %v192
    %v811 = vunpack.c.h.b16 %v192
    %v812 = vunpack.c.l.b16 %v193
    %v813 = vunpack.c.h.b16 %v193
    %v814 = vunpack.c.l.b16 %v194
    %v815 = vunpack.c.h.b16 %v194
    %v816 = vunpack.c.l.b16 %v195
    %v817 = vunpack.c.h.b16 %v195
    %v818 = vunpack.c.l.b16 %v196
    %v819 = vunpack.c.h.b16 %v196
    %v820 = vunpack.c.l.b16 %v197
    %v821 = vunpack.c.h.b16 %v197
    %v822 = vunpack.c.l.b16 %v198
    %v823 = vunpack.c.h.b16 %v198
    %v824 = vunpack.c.l.b16 %v199
    %v825 = vunpack.c.h.b16 %v199
    %v826 = vunpack.c.l.b16 %v200
    %v827 = vunpack.c.h.b16 %v200
    %v828 = vunpack.c.l.b16 %v201
    %v829 = vunpack.c.h.b16 %v201
    %v830 = vunpack.c.l.b16 %v202
    %v831 = vunpack.c.h.b16 %v202
    %v832 = vunpack.c.l.b16 %v203
    %v833 = vunpack.c.h.b16 %v203
    %v834 = vunpack.c.l.b16 %v204
    %v835 = vunpack.c.h.b16 %v204
    %v836 = vunpack.c.l.b16 %v205
    %v837 = vunpack.c.h.b16 %v205
    %v838 = vunpack.c.l.b16 %v206
    %v839 = vunpack.c.h.b16 %v206
    %v840 = vunpack.c.l.b16 %v207
    %v841 = vunpack.c.h.b16 %v207
    %v842 = vunpack.c.l.b16 %v208
    %v843 = vunpack.c.h.b16 %v208
    %v844 = vunpack.c.l.b16 %v209
    %v845 = vunpack.c.h.b16 %v209
    %v846 = vunpack.c.l.b16 %v210
    %v847 = vunpack.c.h.b16 %v210
    %v848 = vunpack.c.l.b16 %v211
    %v849 = vunpack.c.h.b16 %v211
    %v850 = vunpack.c.l.b16 %v212
    %v851 = vunpack.c.h.b16 %v212
    %v852 = vunpack.c.l.b16 %v213
    %v853 = vunpack.c.h.b16 %v213
    %v854 = vunpack.c.l.b16 %v214
    %v855 = vunpack.c.h.b16 %v214
    %v856 = vunpack.c.l.b16 %v215
    %v857 = vunpack.c.h.b16 %v215
    %v858 = vunpack.c.l.b16 %v216
    %v859 = vunpack.c.h.b16 %v216
    %v860 = vunpack.c.l.b16 %v217
    %v861 = vunpack.c.h.b16 %v217
    %v862 = vunpack.c.l.b16 %v218
    %v863 = vunpack.c.h.b16 %v218
    %v864 = vunpack.c.l.b16 %v219
    %v865 = vunpack.c.h.b16 %v219
    %v866 = vunpack.c.l.b16 %v220
    %v867 = vunpack.c.h.b16 %v220
    %v868 = vunpack.c.l.b16 %v221
    %v869 = vunpack.c.h.b16 %v221
    %v870 = vunpack.c.l.b16 %v222
    %v871 = vunpack.c.h.b16 %v222
    %v872 = vunpack.c.l.b16 %v223
    %v873 = vunpack.c.h.b16 %v223
    %v874 = vunpack.c.l.b16 %v224
    %v875 = vunpack.c.h.b16 %v224
    %v876 = vunpack.c.l.b16 %v225
    %v877 = vunpack.c.h.b16 %v225
    %v878 = vunpack.c.l.b16 %v226
    %v879 = vunpack.c.h.b16 %v226
    %v880 = vunpack.c.l.b16 %v227
    %v881 = vunpack.c.h.b16 %v227
    %v882 = vunpack.c.l.b16 %v228
    %v883 = vunpack.c.h.b16 %v228
    %v884 = vunpack.c.l.b16 %v229
    %v885 = vunpack.c.h.b16 %v229
    %v886 = vunpack.c.l.b16 %v230
    %v887 = vunpack.c.h.b16 %v230
    %v888 = vunpack.c.l.b16 %v231
    %v889 = vunpack.c.h.b16 %v231
    %v890 = vunpack.c.l.b16 %v232
    %v891 = vunpack.c.h.b16 %v232
    %v892 = vunpack.c.l.b16 %v233
    %v893 = vunpack.c.h.b16 %v233
    %v894 = vunpack.c.l.b16 %v234
    %v895 = vunpack.c.h.b16 %v234
    %v896 = vunpack.c.l.b16 %v235
    %v897 = vunpack.c.h.b16 %v235
    %v898 = vunpack.c.l.b16 %v236
    %v899 = vunpack.c.h.b16 %v236
    %v900 = vunpack.c.l.b16 %v237
    %v901 = vunpack.c.h.b16 %v237
    %v902 = vunpack.c.l.b16 %v238
    %v903 = vunpack.c.h.b16 %v238
    %v904 = vunpack.c.l.b16 %v239
    %v905 = vunpack.c.h.b16 %v239
    %v906 = vunpack.c.l.b16 %v240
    %v907 = vunpack.c.h.b16 %v240
    %v908 = vunpack.c.l.b16 %v241
    %v909 = vunpack.c.h.b16 %v241
    %v910 = vunpack.c.l.b16 %v242
    %v911 = vunpack.c.h.b16 %v242
    %v912 = vunpack.c.l.b16 %v243
    %v913 = vunpack.c.h.b16 %v243
    %v914 = vunpack.c.l.b16 %v244
    %v915 = vunpack.c.h.b16 %v244
    %v916 = vunpack.c.l.b16 %v245
    %v917 = vunpack.c.h.b16 %v245
    %v918 = vunpack.c.l.b16 %v246
    %v919 = vunpack.c.h.b16 %v246
    %v920 = vunpack.c.l.b16 %v247
    %v921 = vunpack.c.h.b16 %v247
    %v922 = vunpack.c.l.b16 %v248
    %v923 = vunpack.c.h.b16 %v248
    %v924 = vunpack.c.l.b16 %v249
    %v925 = vunpack.c.h.b16 %v249
    %v926 = vunpack.c.l.b16 %v250
    %v927 = vunpack.c.h.b16 %v250
    %v928 = vunpack.c.l.b16 %v251
    %v929 = vunpack.c.h.b16 %v251
    %v930 = vunpack.c.l.b16 %v252
    %v931 = vunpack.c.h.b16 %v252
    %v932 = vunpack.c.l.b16 %v253
    %v933 = vunpack.c.h.b16 %v253
    %v934 = vunpack.c.l.b16 %v254
    %v935 = vunpack.c.h.b16 %v254
    %v936 = vunpack.c.l.b16 %v255
    %v937 = vunpack.c.h.b16 %v255
    %v938 = vunpack.c.l.b16 %v256
    %v939 = vunpack.c.h.b16 %v256
    %v940 = vunpack.c.l.b16 %v257
    %v941 = vunpack.c.h.b16 %v257
    %v942 = vunpack.c.l.b16 %v258
    %v943 = vunpack.c.h.b16 %v258
    %v944 = vunpack.c.l.b16 %v259
    %v945 = vunpack.c.h.b16 %v259
    %v946 = vunpack.c.l.b16 %v260
    %v947 = vunpack.c.h.b16 %v260
    %v948 = vunpack.c.l.b16 %v261
    %v949 = vunpack.c.h.b16 %v261
    %v950 = vunpack.c.l.b16 %v262
    %v951 = vunpack.c.h.b16 %v262
    %v952 = vunpack.c.l.b16 %v263
    %v953 = vunpack.c.h.b16 %v263
    %v954 = vunpack.c.l.b16 %v264
    %v955 = vunpack.c.h.b16 %v264
    %v956 = vunpack.c.l.b16 %v265
    %v957 = vunpack.c.h.b16 %v265
    %v958 = vunpack.c.l.b16 %v266
    %v959 = vunpack.c.h.b16 %v266
    %v960 = vunpack.c.l.b16 %v267
    %v961 = vunpack.c.h.b16 %v267
    %v962 = vunpack.c.l.b16 %v268
    %v963 = vunpack.c.h.b16 %v268
    %v964 = vunpack.c.l.b16 %v269
    %v965 = vunpack.c.h.b16 %v269
    %v966 = vunpack.c.l.b16 %v270
    %v967 = vunpack.c.h.b16 %v270
    %v968 = vunpack.c.l.b16 %v271
    %v969 = vunpack.c.h.b16 %v271
    %v970 = vunpack.c.l.b16 %v272
    %v971 = vunpack.c.h.b16 %v272
    %v972 = vunpack.c.l.b16 %v273
    %v973 = vunpack.c.h.b16 %v273
    %v974 = vunpack.c.l.b16 %v274
    %v975 = vunpack.c.h.b16 %v274
    %v976 = vunpack.c.l.b16 %v275
    %v977 = vunpack.c.h.b16 %v275
    %v978 = vunpack.c.l.b16 %v276
    %v979 = vunpack.c.h.b16 %v276
    %v980 = vunpack.c.l.b16 %v277
    %v981 = vunpack.c.h.b16 %v277
    %v982 = vunpack.c.l.b16 %v278
    %v983 = vunpack.c.h.b16 %v278
    %v984 = vunpack.c.l.b16 %v279
    %v985 = vunpack.c.h.b16 %v279
    %v986 = vunpack.c.l.b16 %v280
    %v987 = vunpack.c.h.b16 %v280
    %v988 = vunpack.c.l.b16 %v281
    %v989 = vunpack.c.h.b16 %v281
    %v990 = vunpack.c.l.b16 %v282
    %v991 = vunpack.c.h.b16 %v282
    %v992 = vunpack.c.l.b16 %v283
    %v993 = vunpack.c.h.b16 %v283
    %v994 = vunpack.c.l.b16 %v284
    %v995 = vunpack.c.h.b16 %v284
    %v996 = vunpack.c.l.b16 %v285
    %v997 = vunpack.c.h.b16 %v285
    %v998 = vunpack.c.l.b16 %v286
    %v999 = vunpack.c.h.b16 %v286
    %v1000 = vunpack.c.l.b16 %v287
    %v1001 = vunpack.c.h.b16 %v287
    %v1002 = vunpack.c.l.b16 %v288
    %v1003 = vunpack.c.h.b16 %v288
    %v1004 = vunpack.c.l.b16 %v289
    %v1005 = vunpack.c.h.b16 %v289
    %v1006 = vunpack.c.l.b16 %v290
    %v1007 = vunpack.c.h.b16 %v290
    %v1008 = vunpack.c.l.b16 %v291
    %v1009 = vunpack.c.h.b16 %v291
    %v1010 = vunpack.c.l.b16 %v292
    %v1011 = vunpack.c.h.b16 %v292
    %v1012 = vunpack.c.l.b16 %v293
    %v1013 = vunpack.c.h.b16 %v293
    %v1014 = vunpack.c.l.b16 %v294
    %v1015 = vunpack.c.h.b16 %v294
    %v1016 = vunpack.c.l.b16 %v295
    %v1017 = vunpack.c.h.b16 %v295
    %v1018 = vunpack.c.l.b16 %v296
    %v1019 = vunpack.c.h.b16 %v296
    %v1020 = vunpack.c.l.b16 %v297
    %v1021 = vunpack.c.h.b16 %v297
    %v1022 = vunpack.c.l.b16 %v298
    %v1023 = vunpack.c.h.b16 %v298
    %v1024 = vunpack.c.l.b16 %v299
    %v1025 = vunpack.c.h.b16 %v299
    %v1026 = vunpack.c.l.b16 %v300
    %v1027 = vunpack.c.h.b16 %v300
    %v1028 = vunpack.c.l.b16 %v301
    %v1029 = vunpack.c.h.b16 %v301
    %v1030 = vunpack.c.l.b16 %v302
    %v1031 = vunpack.c.h.b16 %v302
    %v1032 = vunpack.c.l.b16 %v303
    %v1033 = vunpack.c.h.b16 %v303
    %v1034 = vunpack.c.l.b16 %v304
    %v1035 = vunpack.c.h.b16 %v304
    %v1036 = vunpack.c.l.b16 %v305
    %v1037 = vunpack.c.h.b16 %v305
    %v1038 = vunpack.c.l.b16 %v306
    %v1039 = vunpack.c.h.b16 %v306
    %v1040 = vunpack.c.l.b16 %v307
    %v1041 = vunpack.c.h.b16 %v307
    %v1042 = vunpack.c.l.b16 %v308
    %v1043 = vunpack.c.h.b16 %v308
    %v1044 = vunpack.c.l.b16 %v309
    %v1045 = vunpack.c.h.b16 %v309
    %v1046 = vunpack.c.l.b16 %v310
    %v1047 = vunpack.c.h.b16 %v310
    %v1048 = vunpack.c.l.b16 %v311
    %v1049 = vunpack.c.h.b16 %v311
    %v1050 = vunpack.c.l.b16 %v312
    %v1051 = vunpack.c.h.b16 %v312
    %v1052 = vunpack.c.l.b16 %v313
    %v1053 = vunpack.c.h.b16 %v313
    %v1054 = vunpack.c.l.b16 %v314
    %v1055 = vunpack.c.h.b16 %v314
    %v1056 = vunpack.c.l.b16 %v315
    %v1057 = vunpack.c.h.b16 %v315
    %v1058 = vunpack.c.l.b16 %v316
    %v1059 = vunpack.c.h.b16 %v316
    %v1060 = vunpack.c.l.b16 %v317
    %v1061 = vunpack.c.h.b16 %v317
    %v1062 = vunpack.c.l.b16 %v318
    %v1063 = vunpack.c.h.b16 %v318
    %v1064 = vunpack.c.l.b16 %v319
    %v1065 = vunpack.c.h.b16 %v319
    %v1066 = vunpack.c.l.b16 %v320
    %v1067 = vunpack.c.h.b16 %v320
    %v1068 = vunpack.c.l.b16 %v321
    %v1069 = vunpack.c.h.b16 %v321
    %v1070 = vunpack.c.l.b16 %v322
    %v1071 = vunpack.c.h.b16 %v322
    %v1072 = vunpack.c.l.b16 %v323
    %v1073 = vunpack.c.h.b16 %v323
    %v1074 = vunpack.c.l.b16 %v324
    %v1075 = vunpack.c.h.b16 %v324
    %v1076 = vunpack.c.l.b16 %v325
    %v1077 = vunpack.c.h.b16 %v325
    %v1078 = vunpack.c.l.b16 %v326
    %v1079 = vunpack.c.h.b16 %v326
    %v1080 = vunpack.c.l.b16 %v327
    %v1081 = vunpack.c.h.b16 %v327
    %v1082 = vunpack.c.l.b16 %v328
    %v1083 = vunpack.c.h.b16 %v328
    %v1084 = vunpack.c.l.b16 %v329
    %v1085 = vunpack.c.h.b16 %v329
    %v1086 = vunpack.c.l.b16 %v330
    %v1087 = vunpack.c.h.b16 %v330
    %v1088 = vunpack.c.l.b16 %v331
    %v1089 = vunpack.c.h.b16 %v331
    %v1090 = vunpack.c.l.b16 %v332
    %v1091 = vunpack.c.h.b16 %v332
    %v1092 = vunpack.c.l.b16 %v333
    %v1093 = vunpack.c.h.b16 %v333
    %v1094 = vunpack.c.l.b16 %v334
    %v1095 = vunpack.c.h.b16 %v334
    %v1096 = vunpack.c.l.b16 %v335
    %v1097 = vunpack.c.h.b16 %v335
    %v1098 = vunpack.c.l.b16 %v336
    %v1099 = vunpack.c.h.b16 %v336
    %v1100 = vunpack.c.l.b16 %v337
    %v1101 = vunpack.c.h.b16 %v337
    %v1102 = vunpack.c.l.b16 %v338
    %v1103 = vunpack.c.h.b16 %v338
    %v1104 = vunpack.c.l.b16 %v339
    %v1105 = vunpack.c.h.b16 %v339
    %v1106 = vunpack.c.l.b16 %v340
    %v1107 = vunpack.c.h.b16 %v340
    %v1108 = vunpack.c.l.b16 %v341
    %v1109 = vunpack.c.h.b16 %v341
    %v1110 = vunpack.c.l.b16 %v342
    %v1111 = vunpack.c.h.b16 %v342
    %v1112 = vunpack.c.l.b16 %v343
    %v1113 = vunpack.c.h.b16 %v343
    %v1114 = vunpack.c.l.b16 %v344
    %v1115 = vunpack.c.h.b16 %v344
    %v1116 = vunpack.c.l.b16 %v345
    %v1117 = vunpack.c.h.b16 %v345
    %v1118 = vunpack.c.l.b16 %v346
    %v1119 = vunpack.c.h.b16 %v346
    %v1120 = vunpack.c.l.b16 %v347
    %v1121 = vunpack.c.h.b16 %v347
    %v1122 = vunpack.c.l.b16 %v348
    %v1123 = vunpack.c.h.b16 %v348
    %v1124 = vunpack.c.l.b16 %v349
    %v1125 = vunpack.c.h.b16 %v349
    %v1126 = vunpack.c.l.b16 %v350
    %v1127 = vunpack.c.h.b16 %v350
    %v1128 = vunpack.c.l.b16 %v351
    %v1129 = vunpack.c.h.b16 %v351
    %v1130 = vunpack.c.l.b16 %v352
    %v1131 = vunpack.c.h.b16 %v352
    %v1132 = vunpack.c.l.b16 %v353
    %v1133 = vunpack.c.h.b16 %v353
    %v1134 = vunpack.c.l.b16 %v354
    %v1135 = vunpack.c.h.b16 %v354
    %v1136 = vunpack.c.l.b16 %v355
    %v1137 = vunpack.c.h.b16 %v355
    %v1138 = vunpack.c.l.b16 %v356
    %v1139 = vunpack.c.h.b16 %v356
    %v1140 = vunpack.c.l.b16 %v357
    %v1141 = vunpack.c.h.b16 %v357
    %v1142 = vunpack.c.l.b16 %v358
    %v1143 = vunpack.c.h.b16 %v358
    %v1144 = vunpack.c.l.b16 %v359
    %v1145 = vunpack.c.h.b16 %v359
    %v1146 = vunpack.c.l.b16 %v360
    %v1147 = vunpack.c.h.b16 %v360
    %v1148 = vunpack.c.l.b16 %v361
    %v1149 = vunpack.c.h.b16 %v361
    %v1150 = vunpack.c.l.b16 %v362
    %v1151 = vunpack.c.h.b16 %v362
    %v1152 = vunpack.c.l.b16 %v363
    %v1153 = vunpack.c.h.b16 %v363
    %v1154 = vunpack.c.l.b16 %v364
    %v1155 = vunpack.c.h.b16 %v364
    %v1156 = vunpack.c.l.b16 %v365
    %v1157 = vunpack.c.h.b16 %v365
    %v1158 = vunpack.c.l.b16 %v366
    %v1159 = vunpack.c.h.b16 %v366
    %v1160 = vunpack.c.l.b16 %v367
    %v1161 = vunpack.c.h.b16 %v367
    %v1162 = vunpack.c.l.b16 %v368
    %v1163 = vunpack.c.h.b16 %v368
    %v1164 = vunpack.c.l.b16 %v369
    %v1165 = vunpack.c.h.b16 %v369
    %v1166 = vunpack.c.l.b16 %v370
    %v1167 = vunpack.c.h.b16 %v370
    %v1168 = vunpack.c.l.b16 %v371
    %v1169 = vunpack.c.h.b16 %v371
    %v1170 = vunpack.c.l.b16 %v372
    %v1171 = vunpack.c.h.b16 %v372
    %v1172 = vunpack.c.l.b16 %v373
    %v1173 = vunpack.c.h.b16 %v373
    %v1174 = vunpack.c.l.b16 %v374
    %v1175 = vunpack.c.h.b16 %v374
    %v1176 = vunpack.c.l.b16 %v375
    %v1177 = vunpack.c.h.b16 %v375
    %v1178 = vunpack.c.l.b16 %v376
    %v1179 = vunpack.c.h.b16 %v376
    %v1180 = vunpack.c.l.b16 %v377
    %v1181 = vunpack.c.h.b16 %v377
    %v1182 = vunpack.c.l.b16 %v378
    %v1183 = vunpack.c.h.b16 %v378
    %v1184 = vunpack.c.l.b16 %v379
    %v1185 = vunpack.c.h.b16 %v379
    %v1186 = vunpack.c.l.b16 %v380
    %v1187 = vunpack.c.h.b16 %v380
    %v1188 = vunpack.c.l.b16 %v381
    %v1189 = vunpack.c.h.b16 %v381
    %v1190 = vunpack.c.l.b16 %v382
    %v1191 = vunpack.c.h.b16 %v382
    %v1192 = vunpack.c.l.b16 %v383
    %v1193 = vunpack.c.h.b16 %v383
    %v1194 = vunpack.c.l.b16 %v384
    %v1195 = vunpack.c.h.b16 %v384
    %v1196 = vunpack.c.l.b16 %v385
    %v1197 = vunpack.c.h.b16 %v385
    %v1198 = vunpack.c.l.b16 %v386
    %v1199 = vunpack.c.h.b16 %v386
    %v1200 = vunpack.c.l.b16 %v387
    %v1201 = vunpack.c.h.b16 %v387
    %v1202 = vunpack.c.l.b16 %v388
    %v1203 = vunpack.c.h.b16 %v388
    %v1204 = vunpack.c.l.b16 %v389
    %v1205 = vunpack.c.h.b16 %v389
    %v1206 = vunpack.c.l.b16 %v390
    %v1207 = vunpack.c.h.b16 %v390
    %v1208 = vunpack.c.l.b16 %v391
    %v1209 = vunpack.c.h.b16 %v391
    %v1210 = vunpack.c.l.b16 %v392
    %v1211 = vunpack.c.h.b16 %v392
    %v1212 = vunpack.c.l.b16 %v393
    %v1213 = vunpack.c.h.b16 %v393
    %v1214 = vunpack.c.l.b16 %v394
    %v1215 = vunpack.c.h.b16 %v394
    %v1216 = vunpack.c.l.b16 %v395
    %v1217 = vunpack.c.h.b16 %v395
    %v1218 = vunpack.c.l.b16 %v396
    %v1219 = vunpack.c.h.b16 %v396
    %v1220 = vunpack.c.l.b16 %v397
    %v1221 = vunpack.c.h.b16 %v397
    %v1222 = vunpack.c.l.b16 %v398
    %v1223 = vunpack.c.h.b16 %v398
    %v1224 = vunpack.c.l.b16 %v399
    %v1225 = vunpack.c.h.b16 %v399
    %v1226 = vunpack.c.l.b16 %v400
    %v1227 = vunpack.c.h.b16 %v400
    %v1228 = vunpack.c.l.b16 %v401
    %v1229 = vunpack.c.h.b16 %v401
    %v1230 = vunpack.c.l.b16 %v402
    %v1231 = vunpack.c.h.b16 %v402
    %v1232 = vunpack.c.l.b16 %v403
    %v1233 = vunpack.c.h.b16 %v403
    %v1234 = vunpack.c.l.b16 %v404
    %v1235 = vunpack.c.h.b16 %v404
    %v1236 = vunpack.c.l.b16 %v405
    %v1237 = vunpack.c.h.b16 %v405
    %v1238 = vunpack.c.l.b16 %v406
    %v1239 = vunpack.c.h.b16 %v406
    %v1240 = vunpack.c.l.b16 %v407
    %v1241 = vunpack.c.h.b16 %v407
    %v1242 = vunpack.c.l.b16 %v408
    %v1243 = vunpack.c.h.b16 %v408
    %v1244 = vunpack.c.l.b16 %v409
    %v1245 = vunpack.c.h.b16 %v409
    %v1246 = vunpack.c.l.b16 %v410
    %v1247 = vunpack.c.h.b16 %v410
    %v1248 = vunpack.c.l.b16 %v411
    %v1249 = vunpack.c.h.b16 %v411
    %v1250 = vunpack.c.l.b16 %v412
    %v1251 = vunpack.c.h.b16 %v412
    %v1252 = vunpack.c.l.b16 %v413
    %v1253 = vunpack.c.h.b16 %v413
    %v1254 = vunpack.c.l.b16 %v414
    %v1255 = vunpack.c.h.b16 %v414
    %v1256 = vunpack.c.l.b16 %v415
    %v1257 = vunpack.c.h.b16 %v415
    %v1258 = vunpack.c.l.b16 %v416
    %v1259 = vunpack.c.h.b16 %v416
    %v1260 = vunpack.c.l.b16 %v417
    %v1261 = vunpack.c.h.b16 %v417
    %v1262 = vunpack.c.l.b16 %v418
    %v1263 = vunpack.c.h.b16 %v418
    %v1264 = vunpack.c.l.b16 %v419
    %v1265 = vunpack.c.h.b16 %v419
    %v1266 = vunpack.c.l.b16 %v420
    %v1267 = vunpack.c.h.b16 %v420
    %v1268 = vunpack.c.l.b16 %v421
    %v1269 = vunpack.c.h.b16 %v421
    %v1270 = vunpack.c.l.b16 %v422
    %v1271 = vunpack.c.h.b16 %v422
    %v1272 = vunpack.c.l.b16 %v423
    %v1273 = vunpack.c.h.b16 %v423
    %v1274 = vunpack.c.l.b16 %v424
    %v1275 = vunpack.c.h.b16 %v424
    %v1276 = vunpack.c.l.b16 %v425
    %v1277 = vunpack.c.h.b16 %v425
    %v1278 = vunpack.c.l.b16 %v426
    %v1279 = vunpack.c.h.b16 %v426
    %v1280 = vunpack.c.l.b16 %v427
    %v1281 = vunpack.c.h.b16 %v427
    %v1282 = vunpack.c.l.b16 %v428
    %v1283 = vunpack.c.h.b16 %v428
    %v1284 = vunpack.c.l.b16 %v429
    %v1285 = vunpack.c.h.b16 %v429
    %v1286 = vunpack.c.l.b16 %v430
    %v1287 = vunpack.c.h.b16 %v430
    %v1288 = vunpack.c.l.b16 %v431
    %v1289 = vunpack.c.h.b16 %v431
    %v1290 = vunpack.c.l.b16 %v432
    %v1291 = vunpack.c.h.b16 %v432
    %v1292 = vunpack.c.l.b16 %v433
    %v1293 = vunpack.c.h.b16 %v433
    %v1294 = vunpack.c.l.b16 %v434
    %v1295 = vunpack.c.h.b16 %v434
    %v1296 = vunpack.c.l.b16 %v435
    %v1297 = vunpack.c.h.b16 %v435
    %v1298 = vunpack.c.l.b16 %v436
    %v1299 = vunpack.c.h.b16 %v436
    %v1300 = vunpack.c.l.b16 %v437
    %v1301 = vunpack.c.h.b16 %v437
    %v1302 = vunpack.c.l.b16 %v438
    %v1303 = vunpack.c.h.b16 %v438
    %v1304 = vunpack.c.l.b16 %v439
    %v1305 = vunpack.c.h.b16 %v439
    %v1306 = vunpack.c.l.b16 %v440
    %v1307 = vunpack.c.h.b16 %v440
    %v1308 = vunpack.c.l.b16 %v441
    %v1309 = vunpack.c.h.b16 %v441
    %v1310 = vunpack.c.l.b16 %v442
    %v1311 = vunpack.c.h.b16 %v442
    %v1312 = vunpack.c.l.b16 %v443
    %v1313 = vunpack.c.h.b16 %v443
    %v1314 = vunpack.c.l.b16 %v444
    %v1315 = vunpack.c.h.b16 %v444
    %v1316 = vunpack.c.l.b16 %v445
    %v1317 = vunpack.c.h.b16 %v445
    %v1318 = vunpack.c.l.b16 %v446
    %v1319 = vunpack.c.h.b16 %v446
    %v1320 = vunpack.c.l.b16 %v447
    %v1321 = vunpack.c.h.b16 %v447
    %v1322 = vunpack.c.l.b16 %v448
    %v1323 = vunpack.c.h.b16 %v448
    %v1324 = vunpack.c.l.b16 %v449
    %v1325 = vunpack.c.h.b16 %v449
    %v1326 = vunpack.c.l.b16 %v450
    %v1327 = vunpack.c.h.b16 %v450
    %v1328 = vunpack.c.l.b16 %v451
    %v1329 = vunpack.c.h.b16 %v451
    %v1330 = vunpack.c.l.b16 %v452
    %v1331 = vunpack.c.h.b16 %v452
    %v1332 = vunpack.c.l.b16 %v453
    %v1333 = vunpack.c.h.b16 %v453
    %v1334 = vunpack.c.l.b16 %v454
    %v1335 = vunpack.c.h.b16 %v454
    %v1336 = vunpack.c.l.b16 %v455
    %v1337 = vunpack.c.h.b16 %v455
    %v1338 = vunpack.c.l.b16 %v456
    %v1339 = vunpack.c.h.b16 %v456
    %v1340 = vunpack.c.l.b16 %v457
    %v1341 = vunpack.c.h.b16 %v457
    %v1342 = vunpack.c.l.b16 %v458
    %v1343 = vunpack.c.h.b16 %v458
    %v1344 = vunpack.c.l.b16 %v459
    %v1345 = vunpack.c.h.b16 %v459
    %v1346 = vunpack.c.l.b16 %v460
    %v1347 = vunpack.c.h.b16 %v460
    %v1348 = vunpack.c.l.b16 %v461
    %v1349 = vunpack.c.h.b16 %v461
    %v1350 = vunpack.c.l.b16 %v462
    %v1351 = vunpack.c.h.b16 %v462
    %v1352 = vunpack.c.l.b16 %v463
    %v1353 = vunpack.c.h.b16 %v463
    %v1354 = vunpack.c.l.b16 %v464
    %v1355 = vunpack.c.h.b16 %v464
    %v1356 = vunpack.c.l.b16 %v465
    %v1357 = vunpack.c.h.b16 %v465
    %v1358 = vunpack.c.l.b16 %v466
    %v1359 = vunpack.c.h.b16 %v466
    %v1360 = vunpack.c.l.b16 %v467
    %v1361 = vunpack.c.h.b16 %v467
    %v1362 = vpack.c.b16 %v776, %v774
    %v1363 = vpack.c.b16 %v777, %v775
    %v1364 = vpack.c.b16 %v780, %v778
    %v1365 = vpack.c.b16 %v781, %v779
    %v1366 = vpack.c.b16 %v784, %v782
    %v1367 = vpack.c.b16 %v785, %v783
    %v1368 = vpack.c.b16 %v788, %v786
    %v1369 = vpack.c.b16 %v789, %v787
    %v1370 = vpack.c.b16 %v792, %v790
    %v1371 = vpack.c.b16 %v793, %v791
    %v1372 = vpack.c.b16 %v796, %v794
    %v1373 = vpack.c.b16 %v797, %v795
    %v1374 = vpack.c.b16 %v800, %v798
    %v1375 = vpack.c.b16 %v801, %v799
    %v1376 = vpack.c.b16 %v804, %v802
    %v1377 = vpack.c.b16 %v805, %v803
    %v1378 = vpack.c.b16 %v808, %v806
    %v1379 = vpack.c.b16 %v809, %v807
    %v1380 = vpack.c.b16 %v812, %v810
    %v1381 = vpack.c.b16 %v813, %v811
    %v1382 = vpack.c.b16 %v816, %v814
    %v1383 = vpack.c.b16 %v817, %v815
    %v1384 = vpack.c.b16 %v820, %v818
    %v1385 = vpack.c.b16 %v821, %v819
    %v1386 = vpack.c.b16 %v824, %v822
    %v1387 = vpack.c.b16 %v825, %v823
    %v1388 = vpack.c.b16 %v828, %v826
    %v1389 = vpack.c.b16 %v829, %v827
    %v1390 = vpack.c.b16 %v832, %v830
    %v1391 = vpack.c.b16 %v833, %v831
    %v1392 = vpack.c.b16 %v836, %v834
    %v1393 = vpack.c.b16 %v837, %v835
    %v1394 = vpack.c.b16 %v840, %v838
    %v1395 = vpack.c.b16 %v841, %v839
    %v1396 = vpack.c.b16 %v844, %v842
    %v1397 = vpack.c.b16 %v845, %v843
    %v1398 = vpack.c.b16 %v848, %v846
    %v1399 = vpack.c.b16 %v849, %v847
    %v1400 = vpack.c.b16 %v852, %v850
    %v1401 = vpack.c.b16 %v853, %v851
    %v1402 = vpack.c.b16 %v856, %v854
    %v1403 = vpack.c.b16 %v857, %v855
    %v1404 = vpack.c.b16 %v860, %v858
    %v1405 = vpack.c.b16 %v861, %v859
    %v1406 = vpack.c.b16 %v864, %v862
    %v1407 = vpack.c.b16 %v865, %v863
    %v1408 = vpack.c.b16 %v868, %v866
    %v1409 = vpack.c.b16 %v869, %v867
    %v1410 = vpack.c.b16 %v872, %v870
    %v1411 = vpack.c.b16 %v873, %v871
    %v1412 = vpack.c.b16 %v876, %v874
    %v1413 = vpack.c.b16 %v877, %v875
    %v1414 = vpack.c.b16 %v880, %v878
    %v1415 = vpack.c.b16 %v881, %v879
    %v1416 = vpack.c.b16 %v884, %v882
    %v1417 = vpack.c.b16 %v885, %v883
    %v1418 = vpack.c.b16 %v888, %v886
    %v1419 = vpack.c.b16 %v889, %v887
    %v1420 = vpack.c.b16 %v892, %v890
    %v1421 = vpack.c.b16 %v893, %v891
    %v1422 = vpack.c.b16 %v896, %v894
    %v1423 = vpack.c.b16 %v897, %v895
    %v1424 = vpack.c.b16 %v900, %v898
    %v1425 = vpack.c.b16 %v901, %v899
    %v1426 = vpack.c.b16 %v904, %v902
    %v1427 = vpack.c.b16 %v905, %v903
    %v1428 = vpack.c.b16 %v908, %v906
    %v1429 = vpack.c.b16 %v909, %v907
    %v1430 = vpack.c.b16 %v912, %v910
    %v1431 = vpack.c.b16 %v913, %v911
    %v1432 = vpack.c.b16 %v916, %v914
    %v1433 = vpack.c.b16 %v917, %v915
    %v1434 = vpack.c.b16 %v920, %v918
    %v1435 = vpack.c.b16 %v921, %v919
    %v1436 = vpack.c.b16 %v924, %v922
    %v1437 = vpack.c.b16 %v925, %v923
    %v1438 = vpack.c.b16 %v928, %v926
    %v1439 = vpack.c.b16 %v929, %v927
    %v1440 = vpack.c.b16 %v932, %v930
    %v1441 = vpack.c.b16 %v933, %v931
    %v1442 = vpack.c.b16 %v936, %v934
    %v1443 = vpack.c.b16 %v937, %v935
    %v1444 = vpack.c.b16 %v940, %v938
    %v1445 = vpack.c.b16 %v941, %v939
    %v1446 = vpack.c.b16 %v944, %v942
    %v1447 = vpack.c.b16 %v945, %v943
    %v1448 = vpack.c.b16 %v948, %v946
    %v1449 = vpack.c.b16 %v949, %v947
    %v1450 = vpack.c.b16 %v952, %v950
    %v1451 = vpack.c.b16 %v953, %v951
    %v1452 = vpack.c.b16 %v956, %v954
    %v1453 = vpack.c.b16 %v957, %v955
    %v1454 = vpack.c.b16 %v960, %v958
    %v1455 = vpack.c.b16 %v961, %v959
    %v1456 = vpack.c.b16 %v964, %v962
    %v1457 = vpack.c.b16 %v965, %v963
    %v1458 = vpack.c.b16 %v968, %v966
    %v1459 = vpack.c.b16 %v969, %v967
    %v1460 = vpack.c.b16 %v972, %v970
    %v1461 = vpack.c.b16 %v973, %v971
    %v1462 = vpack.c.b16 %v976, %v974
    %v1463 = vpack.c.b16 %v977, %v975
    %v1464 = vpack.c.b16 %v980, %v978
    %v1465 = vpack.c.b16 %v981, %v979
    %v1466 = vpack.c.b16 %v984, %v982
    %v1467 = vpack.c.b16 %v985, %v983
    %v1468 = vpack.c.b16 %v988, %v986
    %v1469 = vpack.c.b16 %v989, %v987
    %v1470 = vpack.c.b16 %v992, %v990
    %v1471 = vpack.c.b16 %v993, %v991
    %v1472 = vpack.c.b16 %v996, %v994
    %v1473 = vpack.c.b16 %v997, %v995
    %v1474 = vpack.c.b16 %v1000, %v998
    %v1475 = vpack.c.b16 %v1001, %v999
    %v1476 = vpack.c.b16 %v1004, %v1002
    %v1477 = vpack.c.b16 %v1005, %v1003
    %v1478 = vpack.c.b16 %v1008, %v1006
    %v1479 = vpack.c.b16 %v1009, %v1007
    %v1480 = vpack.c.b16 %v1012, %v1010
    %v1481 = vpack.c.b16 %v1013, %v1011
    %v1482 = vpack.c.b16 %v1016, %v1014
    %v1483 = vpack.c.b16 %v1017, %v1015
    %v1484 = vpack.c.b16 %v1020, %v1018
    %v1485 = vpack.c.b16 %v1021, %v1019
    %v1486 = vpack.c.b16 %v1024, %v1022
    %v1487 = vpack.c.b16 %v1025, %v1023
    %v1488 = vpack.c.b16 %v1028, %v1026
    %v1489 = vpack.c.b16 %v1029, %v1027
    %v1490 = vpack.c.b16 %v1032, %v1030
    %v1491 = vpack.c.b16 %v1033, %v1031
    %v1492 = vpack.c.b16 %v1036, %v1034
    %v1493 = vpack.c.b16 %v1037, %v1035
    %v1494 = vpack.c.b16 %v1040, %v1038
    %v1495 = vpack.c.b16 %v1041, %v1039
    %v1496 = vpack.c.b16 %v1044, %v1042
    %v1497 = vpack.c.b16 %v1045, %v1043
    %v1498 = vpack.c.b16 %v1048, %v1046
    %v1499 = vpack.c.b16 %v1049, %v1047
    %v1500 = vpack.c.b16 %v1052, %v1050
    %v1501 = vpack.c.b16 %v1053, %v1051
    %v1502 = vpack.c.b16 %v1056, %v1054
    %v1503 = vpack.c.b16 %v1057, %v1055
    %v1504 = vpack.c.b16 %v1060, %v1058
    %v1505 = vpack.c.b16 %v1061, %v1059
    %v1506 = vpack.c.b16 %v1064, %v1062
    %v1507 = vpack.c.b16 %v1065, %v1063
    %v1508 = vpack.c.b16 %v1068, %v1066
    %v1509 = vpack.c.b16 %v1069, %v1067
    %v1510 = vpack.c.b16 %v1072, %v1070
    %v1511 = vpack.c.b16 %v1073, %v1071
    %v1512 = vpack.c.b16 %v1076, %v1074
    %v1513 = vpack.c.b16 %v1077, %v1075
    %v1514 = vpack.c.b16 %v1080, %v1078
    %v1515 = vpack.c.b16 %v1081, %v1079
    %v1516 = vpack.c.b16 %v1084, %v1082
    %v1517 = vpack.c.b16 %v1085, %v1083
    %v1518 = vpack.c.b16 %v1088, %v1086
    %v1519 = vpack.c.b16 %v1089, %v1087
    %v1520 = vpack.c.b16 %v1092, %v1090
    %v1521 = vpack.c.b16 %v1093, %v1091
    %v1522 = vpack.c.b16 %v1096, %v1094
    %v1523 = vpack.c.b16 %v1097, %v1095
    %v1524 = vpack.c.b16 %v1100, %v1098
    %v1525 = vpack.c.b16 %v1101, %v1099
    %v1526 = vpack.c.b16 %v1104, %v1102
    %v1527 = vpack.c.b16 %v1105, %v1103
    %v1528 = vpack.c.b16 %v1108, %v1106
    %v1529 = vpack.c.b16 %v1109, %v1107
    %v1530 = vpack.c.b16 %v1112, %v1110
    %v1531 = vpack.c.b16 %v1113, %v1111
    %v1532 = vpack.c.b16 %v1116, %v1114
    %v1533 = vpack.c.b16 %v1117, %v1115
    %v1534 = vpack.c.b16 %v1120, %v1118
    %v1535 = vpack.c.b16 %v1121, %v1119
    %v1536 = vpack.c.b16 %v1124, %v1122
    %v1537 = vpack.c.b16 %v1125, %v1123
    %v1538 = vpack.c.b16 %v1128, %v1126
    %v1539 = vpack.c.b16 %v1129, %v1127
    %v1540 = vpack.c.b16 %v1132, %v1130
    %v1541 = vpack.c.b16 %v1133, %v1131
    %v1542 = vpack.c.b16 %v1136, %v1134
    %v1543 = vpack.c.b16 %v1137, %v1135
    %v1544 = vpack.c.b16 %v1140, %v1138
    %v1545 = vpack.c.b16 %v1141, %v1139
    %v1546 = vpack.c.b16 %v1144, %v1142
    %v1547 = vpack.c.b16 %v1145, %v1143
    %v1548 = vpack.c.b16 %v1148, %v1146
    %v1549 = vpack.c.b16 %v1149, %v1147
    %v1550 = vpack.c.b16 %v1152, %v1150
    %v1551 = vpack.c.b16 %v1153, %v1151
    %v1552 = vpack.c.b16 %v1156, %v1154
    %v1553 = vpack.c.b16 %v1157, %v1155
    %v1554 = vpack.c.b16 %v1160, %v1158
    %v1555 = vpack.c.b16 %v1161, %v1159
    %v1556 = vpack.c.b16 %v1164, %v1162
    %v1557 = vpack.c.b16 %v1165, %v1163
    %v1558 = vpack.c.b16 %v1168, %v1166
    %v1559 = vpack.c.b16 %v1169, %v1167
    %v1560 = vpack.c.b16 %v1172, %v1170
    %v1561 = vpack.c.b16 %v1173, %v1171
    %v1562 = vpack.c.b16 %v1176, %v1174
    %v1563 = vpack.c.b16 %v1177, %v1175
    %v1564 = vpack.c.b16 %v1180, %v1178
    %v1565 = vpack.c.b16 %v1181, %v1179
    %v1566 = vpack.c.b16 %v1184, %v1182
    %v1567 = vpack.c.b16 %v1185, %v1183
    %v1568 = vpack.c.b16 %v1188, %v1186
    %v1569 = vpack.c.b16 %v1189, %v1187
    %v1570 = vpack.c.b16 %v1192, %v1190
    %v1571 = vpack.c.b16 %v1193, %v1191
    %v1572 = vpack.c.b16 %v1196, %v1194
    %v1573 = vpack.c.b16 %v1197, %v1195
    %v1574 = vpack.c.b16 %v1200, %v1198
    %v1575 = vpack.c.b16 %v1201, %v1199
    %v1576 = vpack.c.b16 %v1204, %v1202
    %v1577 = vpack.c.b16 %v1205, %v1203
    %v1578 = vpack.c.b16 %v1208, %v1206
    %v1579 = vpack.c.b16 %v1209, %v1207
    %v1580 = vpack.c.b16 %v1212, %v1210
    %v1581 = vpack.c.b16 %v1213, %v1211
    %v1582 = vpack.c.b16 %v1216, %v1214
    %v1583 = vpack.c.b16 %v1217, %v1215
    %v1584 = vpack.c.b16 %v1220, %v1218
    %v1585 = vpack.c.b16 %v1221, %v1219
    %v1586 = vpack.c.b16 %v1224, %v1222
    %v1587 = vpack.c.b16 %v1225, %v1223
    %v1588 = vpack.c.b16 %v1228, %v1226
    %v1589 = vpack.c.b16 %v1229, %v1227
    %v1590 = vpack.c.b16 %v1232, %v1230
    %v1591 = vpack.c.b16 %v1233, %v1231
    %v1592 = vpack.c.b16 %v1236, %v1234
    %v1593 = vpack.c.b16 %v1237, %v1235
    %v1594 = vpack.c.b16 %v1240, %v1238
    %v1595 = vpack.c.b16 %v1241, %v1239
    %v1596 = vpack.c.b16 %v1244, %v1242
    %v1597 = vpack.c.b16 %v1245, %v1243
    %v1598 = vpack.c.b16 %v1248, %v1246
    %v1599 = vpack.c.b16 %v1249, %v1247
    %v1600 = vpack.c.b16 %v1252, %v1250
    %v1601 = vpack.c.b16 %v1253, %v1251
    %v1602 = vpack.c.b16 %v1256, %v1254
    %v1603 = vpack.c.b16 %v1257, %v1255
    %v1604 = vpack.c.b16 %v1260, %v1258
    %v1605 = vpack.c.b16 %v1261, %v1259
    %v1606 = vpack.c.b16 %v1264, %v1262
    %v1607 = vpack.c.b16 %v1265, %v1263
    %v1608 = vpack.c.b16 %v1268, %v1266
    %v1609 = vpack.c.b16 %v1269, %v1267
    %v1610 = vpack.c.b16 %v1272, %v1270
    %v1611 = vpack.c.b16 %v1273, %v1271
    %v1612 = vpack.c.b16 %v1276, %v1274
    %v1613 = vpack.c.b16 %v1277, %v1275
    %v1614 = vpack.c.b16 %v1280, %v1278
    %v1615 = vpack.c.b16 %v1281, %v1279
    %v1616 = vpack.c.b16 %v1284, %v1282
    %v1617 = vpack.c.b16 %v1285, %v1283
    %v1618 = vpack.c.b16 %v1288, %v1286
    %v1619 = vpack.c.b16 %v1289, %v1287
    %v1620 = vpack.c.b16 %v1292, %v1290
    %v1621 = vpack.c.b16 %v1293, %v1291
    %v1622 = vpack.c.b16 %v1296, %v1294
    %v1623 = vpack.c.b16 %v1297, %v1295
    %v1624 = vpack.c.b16 %v1300, %v1298
    %v1625 = vpack.c.b16 %v1301, %v1299
    %v1626 = vpack.c.b16 %v1304, %v1302
    %v1627 = vpack.c.b16 %v1305, %v1303
    %v1628 = vpack.c.b16 %v1308, %v1306
    %v1629 = vpack.c.b16 %v1309, %v1307
    %v1630 = vpack.c.b16 %v1312, %v1310
    %v1631 = vpack.c.b16 %v1313, %v1311
    %v1632 = vpack.c.b16 %v1316, %v1314
    %v1633 = vpack.c.b16 %v1317, %v1315
    %v1634 = vpack.c.b16 %v1320, %v1318
    %v1635 = vpack.c.b16 %v1321, %v1319
    %v1636 = vpack.c.b16 %v1324, %v1322
    %v1637 = vpack.c.b16 %v1325, %v1323
    %v1638 = vpack.c.b16 %v1328, %v1326
    %v1639 = vpack.c.b16 %v1329, %v1327
    %v1640 = vpack.c.b16 %v1332, %v1330
    %v1641 = vpack.c.b16 %v1333, %v1331
    %v1642 = vpack.c.b16 %v1336, %v1334
    %v1643 = vpack.c.b16 %v1337, %v1335
    %v1644 = vpack.c.b16 %v1340, %v1338
    %v1645 = vpack.c.b16 %v1341, %v1339
    %v1646 = vpack.c.b16 %v1344, %v1342
    %v1647 = vpack.c.b16 %v1345, %v1343
    %v1648 = vpack.c.b16 %v1348, %v1346
    %v1649 = vpack.c.b16 %v1349, %v1347
    %v1650 = vpack.c.b16 %v1352, %v1350
    %v1651 = vpack.c.b16 %v1353, %v1351
    %v1652 = vpack.c.b16 %v1356, %v1354
    %v1653 = vpack.c.b16 %v1357, %v1355
    %v1654 = vpack.c.b16 %v1360, %v1358
    %v1655 = vpack.c.b16 %v1361, %v1359
    %vm1950 = vcmask 392192
    %v1952 = vsel %vm1950, %v173, 0
    %1954 = vmatprep.subr.bf16.mxu0 %v1363
    %1955 = vmatpush1.bf16.msra.mxu0 %v1362
    %1956 = vmatprep.subr.bf16.mxu0 %v1365
    %1957 = vmatpush1.bf16.msra.mxu0 %v1364
    %1958 = vmatprep.subr.bf16.mxu0 %v1367
    %1959 = vmatpush1.bf16.msra.mxu0 %v1366
    %1960 = vmatprep.subr.bf16.mxu0 %v1369
    %1961 = vmatpush1.bf16.msra.mxu0 %v1368
    %1962 = vmatprep.subr.bf16.mxu0 %v1371
    %1963 = vmatpush1.bf16.msra.mxu0 %v1370
    %1964 = vmatprep.subr.bf16.mxu0 %v1373
    %1965 = vmatpush1.bf16.msra.mxu0 %v1372
    %1966 = vmatprep.subr.bf16.mxu0 %v1375
    %1967 = vmatpush1.bf16.msra.mxu0 %v1374
    %1968 = vmatprep.subr.bf16.mxu0 %v1377
    %1969 = vmatpush1.bf16.msra.mxu0 %v1376
    %1970 = vmatprep.subr.bf16.mxu0 %v1379
    %1971 = vmatpush1.bf16.msra.mxu0 %v1378
    %1972 = vmatprep.subr.bf16.mxu0 %v1381
    %1973 = vmatpush1.bf16.msra.mxu0 %v1380
    %1974 = vmatprep.subr.bf16.mxu0 %v1383
    %1975 = vmatpush1.bf16.msra.mxu0 %v1382
    %1976 = vmatprep.subr.bf16.mxu0 %v1385
    %1977 = vmatpush1.bf16.msra.mxu0 %v1384
    %1978 = vmatprep.subr.bf16.mxu0 %v1387
    %1979 = vmatpush1.bf16.msra.mxu0 %v1386
    %1980 = vmatprep.subr.bf16.mxu0 %v1389
    %1981 = vmatpush1.bf16.msra.mxu0 %v1388
    %1982 = vmatprep.subr.bf16.mxu0 %v1391
    %1983 = vmatpush1.bf16.msra.mxu0 %v1390
    %1984 = vmatprep.subr.bf16.mxu0 %v1393
    %1985 = vmatpush1.bf16.msra.mxu0 %v1392
    %1986 = vmatprep.mubr.bf16.mxu0 %v156
    %1987 = vmatmul.mubr.bf16.gmra.mrb[0].mxu0 %v155
    %v1988 = vpop.f32.mrb[0].mxu0
    %v1989 = vadd.f32 %v473, %v1988
    %v1990 = vpop.f32.mrb[0].mxu0
    %v1991 = vadd.f32 %v477, %v1990
    %v1992 = vpop.f32.mrb[0].mxu0
    %v1993 = vadd.f32 %v473, %v1992
    %v1994 = vpop.f32.mrb[0].mxu0
    %v1995 = vadd.f32 %v477, %v1994
    %1996 = vdwg.mxu0
    %1997 = vmatprep.subr.bf16.mxu0 %v1395
    %1998 = vmatpush1.bf16.msra.mxu0 %v1394
    %1999 = vmatprep.subr.bf16.mxu0 %v1397
    %2000 = vmatpush1.bf16.msra.mxu0 %v1396
    %2001 = vmatprep.subr.bf16.mxu0 %v1399
    %2002 = vmatpush1.bf16.msra.mxu0 %v1398
    %2003 = vmatprep.subr.bf16.mxu0 %v1401
    %2004 = vmatpush1.bf16.msra.mxu0 %v1400
    %2005 = vmatprep.subr.bf16.mxu0 %v1403
    %2006 = vmatpush1.bf16.msra.mxu0 %v1402
    %2007 = vmatprep.subr.bf16.mxu0 %v1405
    %2008 = vmatpush1.bf16.msra.mxu0 %v1404
    %2009 = vmatprep.subr.bf16.mxu0 %v1407
    %2010 = vmatpush1.bf16.msra.mxu0 %v1406
    %2011 = vmatprep.subr.bf16.mxu0 %v1409
    %2012 = vmatpush1.bf16.msra.mxu0 %v1408
    %2013 = vmatprep.subr.bf16.mxu0 %v1411
    %2014 = vmatpush1.bf16.msra.mxu0 %v1410
    %2015 = vmatprep.subr.bf16.mxu0 %v1413
    %2016 = vmatpush1.bf16.msra.mxu0 %v1412
    %2017 = vmatprep.subr.bf16.mxu0 %v1415
    %2018 = vmatpush1.bf16.msra.mxu0 %v1414
    %2019 = vmatprep.subr.bf16.mxu0 %v1417
    %2020 = vmatpush1.bf16.msra.mxu0 %v1416
    %2021 = vmatprep.subr.bf16.mxu0 %v1419
    %2022 = vmatpush1.bf16.msra.mxu0 %v1418
    %2023 = vmatprep.subr.bf16.mxu0 %v1421
    %2024 = vmatpush1.bf16.msra.mxu0 %v1420
    %2025 = vmatprep.subr.bf16.mxu0 %v1423
    %2026 = vmatpush1.bf16.msra.mxu0 %v1422
    %2027 = vmatprep.subr.bf16.mxu0 %v1425
    %2028 = vmatpush1.bf16.msra.mxu0 %v1424
    %2029 = vmatprep.mubr.bf16.mxu0 %v158
    %2030 = vmatmul.mubr.bf16.gmra.mrb[0].mxu0 %v157
    %v2031 = vpop.f32.mrb[0].mxu0
    %v2032 = vadd.f32 %v1989, %v2031
    %v2033 = vpop.f32.mrb[0].mxu0
    %v2034 = vadd.f32 %v1991, %v2033
    %v2035 = vpop.f32.mrb[0].mxu0
    %v2036 = vadd.f32 %v1993, %v2035
    %v2037 = vpop.f32.mrb[0].mxu0
    %v2038 = vadd.f32 %v1995, %v2037
    %2039 = vdwg.mxu0
    %2040 = vmatprep.subr.bf16.mxu0 %v1427
    %2041 = vmatpush1.bf16.msra.mxu0 %v1426
    %2042 = vmatprep.subr.bf16.mxu0 %v1429
    %2043 = vmatpush1.bf16.msra.mxu0 %v1428
    %2044 = vmatprep.subr.bf16.mxu0 %v1431
    %2045 = vmatpush1.bf16.msra.mxu0 %v1430
    %2046 = vmatprep.subr.bf16.mxu0 %v1433
    %2047 = vmatpush1.bf16.msra.mxu0 %v1432
    %2048 = vmatprep.subr.bf16.mxu0 %v1435
    %2049 = vmatpush1.bf16.msra.mxu0 %v1434
    %2050 = vmatprep.subr.bf16.mxu0 %v1437
    %2051 = vmatpush1.bf16.msra.mxu0 %v1436
    %2052 = vmatprep.subr.bf16.mxu0 %v1439
    %2053 = vmatpush1.bf16.msra.mxu0 %v1438
    %2054 = vmatprep.subr.bf16.mxu0 %v1441
    %2055 = vmatpush1.bf16.msra.mxu0 %v1440
    %2056 = vmatprep.subr.bf16.mxu0 %v1443
    %2057 = vmatpush1.bf16.msra.mxu0 %v1442
    %2058 = vmatprep.subr.bf16.mxu0 %v1445
    %2059 = vmatpush1.bf16.msra.mxu0 %v1444
    %2060 = vmatprep.subr.bf16.mxu0 %v1447
    %2061 = vmatpush1.bf16.msra.mxu0 %v1446
    %2062 = vmatprep.subr.bf16.mxu0 %v1449
    %2063 = vmatpush1.bf16.msra.mxu0 %v1448
    %2064 = vmatprep.subr.bf16.mxu0 %v1451
    %2065 = vmatpush1.bf16.msra.mxu0 %v1450
    %2066 = vmatprep.subr.bf16.mxu0 %v1453
    %2067 = vmatpush1.bf16.msra.mxu0 %v1452
    %2068 = vmatprep.subr.bf16.mxu0 %v1455
    %2069 = vmatpush1.bf16.msra.mxu0 %v1454
    %2070 = vmatprep.subr.bf16.mxu0 %v1457
    %2071 = vmatpush1.bf16.msra.mxu0 %v1456
    %2072 = vmatprep.mubr.bf16.mxu0 %v160
    %2073 = vmatmul.mubr.bf16.gmra.mrb[0].mxu0 %v159
    %v2074 = vpop.f32.mrb[0].mxu0
    %v2075 = vadd.f32 %v2032, %v2074
    %v2076 = vpop.f32.mrb[0].mxu0
    %v2077 = vadd.f32 %v2034, %v2076
    %v2078 = vpop.f32.mrb[0].mxu0
    %v2079 = vadd.f32 %v2036, %v2078
    %v2080 = vpop.f32.mrb[0].mxu0
    %v2081 = vadd.f32 %v2038, %v2080
    %2082 = vdwg.mxu0
    %2083 = vmatprep.subr.bf16.mxu0 %v1459
    %2084 = vmatpush1.bf16.msra.mxu0 %v1458
    %2085 = vmatprep.subr.bf16.mxu0 %v1461
    %2086 = vmatpush1.bf16.msra.mxu0 %v1460
    %2087 = vmatprep.subr.bf16.mxu0 %v1463
    %2088 = vmatpush1.bf16.msra.mxu0 %v1462
    %2089 = vmatprep.subr.bf16.mxu0 %v1465
    %2090 = vmatpush1.bf16.msra.mxu0 %v1464
    %2091 = vmatprep.subr.bf16.mxu0 %v1467
    %2092 = vmatpush1.bf16.msra.mxu0 %v1466
    %2093 = vmatprep.subr.bf16.mxu0 %v1469
    %2094 = vmatpush1.bf16.msra.mxu0 %v1468
    %2095 = vmatprep.subr.bf16.mxu0 %v1471
    %2096 = vmatpush1.bf16.msra.mxu0 %v1470
    %2097 = vmatprep.subr.bf16.mxu0 %v1473
    %2098 = vmatpush1.bf16.msra.mxu0 %v1472
    %2099 = vmatprep.subr.bf16.mxu0 %v1475
    %2100 = vmatpush1.bf16.msra.mxu0 %v1474
    %2101 = vmatprep.subr.bf16.mxu0 %v1477
    %2102 = vmatpush1.bf16.msra.mxu0 %v1476
    %2103 = vmatprep.subr.bf16.mxu0 %v1479
    %2104 = vmatpush1.bf16.msra.mxu0 %v1478
    %2105 = vmatprep.subr.bf16.mxu0 %v1481
    %2106 = vmatpush1.bf16.msra.mxu0 %v1480
    %2107 = vmatprep.subr.bf16.mxu0 %v1483
    %2108 = vmatpush1.bf16.msra.mxu0 %v1482
    %2109 = vmatprep.subr.bf16.mxu0 %v1485
    %2110 = vmatpush1.bf16.msra.mxu0 %v1484
    %2111 = vmatprep.subr.bf16.mxu0 %v1487
    %2112 = vmatpush1.bf16.msra.mxu0 %v1486
    %2113 = vmatprep.subr.bf16.mxu0 %v1489
    %2114 = vmatpush1.bf16.msra.mxu0 %v1488
    %2115 = vmatprep.mubr.bf16.mxu0 %v162
    %2116 = vmatmul.mubr.bf16.gmra.mrb[0].mxu0 %v161
    %v2117 = vpop.f32.mrb[0].mxu0
    %v2118 = vadd.f32 %v2075, %v2117
    %v2119 = vpop.f32.mrb[0].mxu0
    %v2120 = vadd.f32 %v2077, %v2119
    %v2121 = vpop.f32.mrb[0].mxu0
    %v2122 = vadd.f32 %v2079, %v2121
    %v2123 = vpop.f32.mrb[0].mxu0
    %v2124 = vadd.f32 %v2081, %v2123
    %2125 = vdwg.mxu0
    %2126 = vmatprep.subr.bf16.mxu0 %v1491
    %2127 = vmatpush1.bf16.msra.mxu0 %v1490
    %2128 = vmatprep.subr.bf16.mxu0 %v1493
    %2129 = vmatpush1.bf16.msra.mxu0 %v1492
    %2130 = vmatprep.subr.bf16.mxu0 %v1495
    %2131 = vmatpush1.bf16.msra.mxu0 %v1494
    %2132 = vmatprep.subr.bf16.mxu0 %v1497
    %2133 = vmatpush1.bf16.msra.mxu0 %v1496
    %2134 = vmatprep.subr.bf16.mxu0 %v1499
    %2135 = vmatpush1.bf16.msra.mxu0 %v1498
    %2136 = vmatprep.subr.bf16.mxu0 %v1501
    %2137 = vmatpush1.bf16.msra.mxu0 %v1500
    %2138 = vmatprep.subr.bf16.mxu0 %v1503
    %2139 = vmatpush1.bf16.msra.mxu0 %v1502
    %2140 = vmatprep.subr.bf16.mxu0 %v1505
    %2141 = vmatpush1.bf16.msra.mxu0 %v1504
    %2142 = vmatprep.subr.bf16.mxu0 %v1507
    %2143 = vmatpush1.bf16.msra.mxu0 %v1506
    %2144 = vmatprep.subr.bf16.mxu0 %v1509
    %2145 = vmatpush1.bf16.msra.mxu0 %v1508
    %2146 = vmatprep.subr.bf16.mxu0 %v1511
    %2147 = vmatpush1.bf16.msra.mxu0 %v1510
    %2148 = vmatprep.subr.bf16.mxu0 %v1513
    %2149 = vmatpush1.bf16.msra.mxu0 %v1512
    %2150 = vmatprep.subr.bf16.mxu0 %v1515
    %2151 = vmatpush1.bf16.msra.mxu0 %v1514
    %2152 = vmatprep.subr.bf16.mxu0 %v1517
    %2153 = vmatpush1.bf16.msra.mxu0 %v1516
    %2154 = vmatprep.subr.bf16.mxu0 %v1519
    %2155 = vmatpush1.bf16.msra.mxu0 %v1518
    %2156 = vmatprep.subr.bf16.mxu0 %v1521
    %2157 = vmatpush1.bf16.msra.mxu0 %v1520
    %2158 = vmatprep.mubr.bf16.mxu0 %v164
    %2159 = vmatmul.mubr.bf16.gmra.mrb[0].mxu0 %v163
    %v2160 = vpop.f32.mrb[0].mxu0
    %v2161 = vadd.f32 %v2118, %v2160
    %v2162 = vpop.f32.mrb[0].mxu0
    %v2163 = vadd.f32 %v2120, %v2162
    %v2164 = vpop.f32.mrb[0].mxu0
    %v2165 = vadd.f32 %v2122, %v2164
    %v2166 = vpop.f32.mrb[0].mxu0
    %v2167 = vadd.f32 %v2124, %v2166
    %2168 = vdwg.mxu0
    %2169 = vmatprep.subr.bf16.mxu0 %v1523
    %2170 = vmatpush1.bf16.msra.mxu0 %v1522
    %2171 = vmatprep.subr.bf16.mxu0 %v1525
    %2172 = vmatpush1.bf16.msra.mxu0 %v1524
    %2173 = vmatprep.subr.bf16.mxu0 %v1527
    %2174 = vmatpush1.bf16.msra.mxu0 %v1526
    %2175 = vmatprep.subr.bf16.mxu0 %v1529
    %2176 = vmatpush1.bf16.msra.mxu0 %v1528
    %2177 = vmatprep.subr.bf16.mxu0 %v1531
    %2178 = vmatpush1.bf16.msra.mxu0 %v1530
    %2179 = vmatprep.subr.bf16.mxu0 %v1533
    %2180 = vmatpush1.bf16.msra.mxu0 %v1532
    %2181 = vmatprep.subr.bf16.mxu0 %v1535
    %2182 = vmatpush1.bf16.msra.mxu0 %v1534
    %2183 = vmatprep.subr.bf16.mxu0 %v1537
    %2184 = vmatpush1.bf16.msra.mxu0 %v1536
    %2185 = vmatprep.subr.bf16.mxu0 %v1539
    %2186 = vmatpush1.bf16.msra.mxu0 %v1538
    %2187 = vmatprep.subr.bf16.mxu0 %v1541
    %2188 = vmatpush1.bf16.msra.mxu0 %v1540
    %2189 = vmatprep.subr.bf16.mxu0 %v1543
    %2190 = vmatpush1.bf16.msra.mxu0 %v1542
    %2191 = vmatprep.subr.bf16.mxu0 %v1545
    %2192 = vmatpush1.bf16.msra.mxu0 %v1544
    %2193 = vmatprep.subr.bf16.mxu0 %v1547
    %2194 = vmatpush1.bf16.msra.mxu0 %v1546
    %2195 = vmatprep.subr.bf16.mxu0 %v1549
    %2196 = vmatpush1.bf16.msra.mxu0 %v1548
    %2197 = vmatprep.subr.bf16.mxu0 %v1551
    %2198 = vmatpush1.bf16.msra.mxu0 %v1550
    %2199 = vmatprep.subr.bf16.mxu0 %v1553
    %2200 = vmatpush1.bf16.msra.mxu0 %v1552
    %2201 = vmatprep.mubr.bf16.mxu0 %v166
    %2202 = vmatmul.mubr.bf16.gmra.mrb[0].mxu0 %v165
    %v2203 = vpop.f32.mrb[0].mxu0
    %v2204 = vadd.f32 %v2161, %v2203
    %v2205 = vpop.f32.mrb[0].mxu0
    %v2206 = vadd.f32 %v2163, %v2205
    %v2207 = vpop.f32.mrb[0].mxu0
    %v2208 = vadd.f32 %v2165, %v2207
    %v2209 = vpop.f32.mrb[0].mxu0
    %v2210 = vadd.f32 %v2167, %v2209
    %2211 = vdwg.mxu0
    %2212 = vmatprep.subr.bf16.mxu0 %v1555
    %2213 = vmatpush1.bf16.msra.mxu0 %v1554
    %2214 = vmatprep.subr.bf16.mxu0 %v1557
    %2215 = vmatpush1.bf16.msra.mxu0 %v1556
    %2216 = vmatprep.subr.bf16.mxu0 %v1559
    %2217 = vmatpush1.bf16.msra.mxu0 %v1558
    %2218 = vmatprep.subr.bf16.mxu0 %v1561
    %2219 = vmatpush1.bf16.msra.mxu0 %v1560
    %2220 = vmatprep.subr.bf16.mxu0 %v1563
    %2221 = vmatpush1.bf16.msra.mxu0 %v1562
    %2222 = vmatprep.subr.bf16.mxu0 %v1565
    %2223 = vmatpush1.bf16.msra.mxu0 %v1564
    %2224 = vmatprep.subr.bf16.mxu0 %v1567
    %2225 = vmatpush1.bf16.msra.mxu0 %v1566
    %2226 = vmatprep.subr.bf16.mxu0 %v1569
    %2227 = vmatpush1.bf16.msra.mxu0 %v1568
    %2228 = vmatprep.subr.bf16.mxu0 %v1571
    %2229 = vmatpush1.bf16.msra.mxu0 %v1570
    %2230 = vmatprep.subr.bf16.mxu0 %v1573
    %2231 = vmatpush1.bf16.msra.mxu0 %v1572
    %2232 = vmatprep.subr.bf16.mxu0 %v1575
    %2233 = vmatpush1.bf16.msra.mxu0 %v1574
    %2234 = vmatprep.subr.bf16.mxu0 %v1577
    %2235 = vmatpush1.bf16.msra.mxu0 %v1576
    %2236 = vmatprep.subr.bf16.mxu0 %v1579
    %2237 = vmatpush1.bf16.msra.mxu0 %v1578
    %2238 = vmatprep.subr.bf16.mxu0 %v1581
    %2239 = vmatpush1.bf16.msra.mxu0 %v1580
    %2240 = vmatprep.subr.bf16.mxu0 %v1583
    %2241 = vmatpush1.bf16.msra.mxu0 %v1582
    %2242 = vmatprep.subr.bf16.mxu0 %v1585
    %2243 = vmatpush1.bf16.msra.mxu0 %v1584
    %2244 = vmatprep.mubr.bf16.mxu0 %v168
    %2245 = vmatmul.mubr.bf16.gmra.mrb[0].mxu0 %v167
    %v2246 = vpop.f32.mrb[0].mxu0
    %v2247 = vadd.f32 %v2204, %v2246
    %v2248 = vpop.f32.mrb[0].mxu0
    %v2249 = vadd.f32 %v2206, %v2248
    %v2250 = vpop.f32.mrb[0].mxu0
    %v2251 = vadd.f32 %v2208, %v2250
    %v2252 = vpop.f32.mrb[0].mxu0
    %v2253 = vadd.f32 %v2210, %v2252
    %2254 = vdwg.mxu0
    %2255 = vmatprep.subr.bf16.mxu0 %v1587
    %2256 = vmatpush1.bf16.msra.mxu0 %v1586
    %2257 = vmatprep.subr.bf16.mxu0 %v1589
    %2258 = vmatpush1.bf16.msra.mxu0 %v1588
    %2259 = vmatprep.subr.bf16.mxu0 %v1591
    %2260 = vmatpush1.bf16.msra.mxu0 %v1590
    %2261 = vmatprep.subr.bf16.mxu0 %v1593
    %2262 = vmatpush1.bf16.msra.mxu0 %v1592
    %2263 = vmatprep.subr.bf16.mxu0 %v1595
    %2264 = vmatpush1.bf16.msra.mxu0 %v1594
    %2265 = vmatprep.subr.bf16.mxu0 %v1597
    %2266 = vmatpush1.bf16.msra.mxu0 %v1596
    %2267 = vmatprep.subr.bf16.mxu0 %v1599
    %2268 = vmatpush1.bf16.msra.mxu0 %v1598
    %2269 = vmatprep.subr.bf16.mxu0 %v1601
    %2270 = vmatpush1.bf16.msra.mxu0 %v1600
    %2271 = vmatprep.subr.bf16.mxu0 %v1603
    %2272 = vmatpush1.bf16.msra.mxu0 %v1602
    %2273 = vmatprep.subr.bf16.mxu0 %v1605
    %2274 = vmatpush1.bf16.msra.mxu0 %v1604
    %2275 = vmatprep.subr.bf16.mxu0 %v1607
    %2276 = vmatpush1.bf16.msra.mxu0 %v1606
    %2277 = vmatprep.subr.bf16.mxu0 %v1609
    %2278 = vmatpush1.bf16.msra.mxu0 %v1608
    %2279 = vmatprep.subr.bf16.mxu0 %v1611
    %2280 = vmatpush1.bf16.msra.mxu0 %v1610
    %2281 = vmatprep.subr.bf16.mxu0 %v1613
    %2282 = vmatpush1.bf16.msra.mxu0 %v1612
    %2283 = vmatprep.subr.bf16.mxu0 %v1615
    %2284 = vmatpush1.bf16.msra.mxu0 %v1614
    %2285 = vmatprep.subr.bf16.mxu0 %v1617
    %2286 = vmatpush1.bf16.msra.mxu0 %v1616
    %2287 = vmatprep.mubr.bf16.mxu0 %v170
    %2288 = vmatmul.mubr.bf16.gmra.mrb[0].mxu0 %v169
    %v2289 = vpop.f32.mrb[0].mxu0
    %v2290 = vadd.f32 %v2247, %v2289
    %v2291 = vpop.f32.mrb[0].mxu0
    %v2292 = vadd.f32 %v2249, %v2291
    %v2293 = vpop.f32.mrb[0].mxu0
    %v2294 = vadd.f32 %v2251, %v2293
    %v2295 = vpop.f32.mrb[0].mxu0
    %v2296 = vadd.f32 %v2253, %v2295
    %2297 = vdwg.mxu0
    %2298 = vmatprep.subr.bf16.mxu0 %v1619
    %2299 = vmatpush1.bf16.msra.mxu0 %v1618
    %2300 = vmatprep.subr.bf16.mxu0 %v1621
    %2301 = vmatpush1.bf16.msra.mxu0 %v1620
    %2302 = vmatprep.subr.bf16.mxu0 %v1623
    %2303 = vmatpush1.bf16.msra.mxu0 %v1622
    %2304 = vmatprep.subr.bf16.mxu0 %v1625
    %2305 = vmatpush1.bf16.msra.mxu0 %v1624
    %2306 = vmatprep.subr.bf16.mxu0 %v1627
    %2307 = vmatpush1.bf16.msra.mxu0 %v1626
    %2308 = vmatprep.subr.bf16.mxu0 %v1629
    %2309 = vmatpush1.bf16.msra.mxu0 %v1628
    %2310 = vmatprep.subr.bf16.mxu0 %v1631
    %2311 = vmatpush1.bf16.msra.mxu0 %v1630
    %2312 = vmatprep.subr.bf16.mxu0 %v1633
    %2313 = vmatpush1.bf16.msra.mxu0 %v1632
    %2314 = vmatprep.subr.bf16.mxu0 %v1635
    %2315 = vmatpush1.bf16.msra.mxu0 %v1634
    %2316 = vmatprep.subr.bf16.mxu0 %v1637
    %2317 = vmatpush1.bf16.msra.mxu0 %v1636
    %2318 = vmatprep.subr.bf16.mxu0 %v1639
    %2319 = vmatpush1.bf16.msra.mxu0 %v1638
    %2320 = vmatprep.subr.bf16.mxu0 %v1641
    %2321 = vmatpush1.bf16.msra.mxu0 %v1640
    %2322 = vmatprep.subr.bf16.mxu0 %v1643
    %2323 = vmatpush1.bf16.msra.mxu0 %v1642
    %2324 = vmatprep.subr.bf16.mxu0 %v1645
    %2325 = vmatpush1.bf16.msra.mxu0 %v1644
    %2326 = vmatprep.subr.bf16.mxu0 %v1647
    %2327 = vmatpush1.bf16.msra.mxu0 %v1646
    %2328 = vmatprep.subr.bf16.mxu0 %v1649
    %2329 = vmatpush1.bf16.msra.mxu0 %v1648
    %2330 = vmatprep.mubr.bf16.mxu0 %v172
    %2331 = vmatmul.mubr.bf16.gmra.mrb[0].mxu0 %v171
    %v2332 = vpop.f32.mrb[0].mxu0
    %v2333 = vadd.f32 %v2290, %v2332
    %v2334 = vpop.f32.mrb[0].mxu0
    %v2335 = vadd.f32 %v2292, %v2334
    %v2336 = vpop.f32.mrb[0].mxu0
    %v2337 = vadd.f32 %v2294, %v2336
    %v2338 = vpop.f32.mrb[0].mxu0
    %v2339 = vadd.f32 %v2296, %v2338
    %2340 = vdwg.mxu0
    %2341 = vmatprep.subr.bf16.mxu0 %v1651
    %2342 = vmatpush1.bf16.msra.mxu0 %v1650
    %2343 = vmatprep.subr.bf16.mxu0 %v1653
    %2344 = vmatpush1.bf16.msra.mxu0 %v1652
    %2345 = vmatprep.subr.bf16.mxu0 %v1655
    %2346 = vmatpush1.bf16.msra.mxu0 %v1654
    %2347 = vmatprep.subr.bf16.mxu0 0
    %2348 = vmatpush1.bf16.msra.mxu0 0
    %2349 = vmatprep.subr.bf16.mxu0 0
    %2350 = vmatpush1.bf16.msra.mxu0 0
    %2351 = vmatprep.subr.bf16.mxu0 0
    %2352 = vmatpush1.bf16.msra.mxu0 0
    %2353 = vmatprep.subr.bf16.mxu0 0
    %2354 = vmatpush1.bf16.msra.mxu0 0
    %2355 = vmatprep.subr.bf16.mxu0 0
    %2356 = vmatpush1.bf16.msra.mxu0 0
    %2357 = vmatprep.subr.bf16.mxu0 0
    %2358 = vmatpush1.bf16.msra.mxu0 0
    %2359 = vmatprep.subr.bf16.mxu0 0
    %2360 = vmatpush1.bf16.msra.mxu0 0
    %2361 = vmatprep.subr.bf16.mxu0 0
    %2362 = vmatpush1.bf16.msra.mxu0 0
    %2363 = vmatprep.subr.bf16.mxu0 0
    %2364 = vmatpush1.bf16.msra.mxu0 0
    %2365 = vmatprep.subr.bf16.mxu0 0
    %2366 = vmatpush1.bf16.msra.mxu0 0
    %2367 = vmatprep.subr.bf16.mxu0 0
    %2368 = vmatpush1.bf16.msra.mxu0 0
    %2369 = vmatprep.subr.bf16.mxu0 0
    %2370 = vmatpush1.bf16.msra.mxu0 0
    %2371 = vmatprep.subr.bf16.mxu0 0
    %2372 = vmatpush1.bf16.msra.mxu0 0
    %2373 = vmatprep.mubr.bf16.mxu0 0
    %2374 = vmatmul.mubr.bf16.gmra.mrb[0].mxu0 %v1952
    %v2375 = vpop.f32.mrb[0].mxu0
    %v2376 = vadd.f32 %v2333, %v2375
    %v2377 = vpop.f32.mrb[0].mxu0
    %v2378 = vadd.f32 %v2335, %v2377
    %v2379 = vpop.f32.mrb[0].mxu0
    %v2380 = vadd.f32 %v2337, %v2379
    %v2381 = vpop.f32.mrb[0].mxu0
    %v2382 = vadd.f32 %v2339, %v2381
    %2383 = vdwg.mxu0
    %v2384 = vmax.f32 %v2376, 0.0
    %v2385 = vmax.f32 %v2378, 0.0
    %v2386 = vmax.f32 %v2380, 0.0
    %v2387 = vmax.f32 %v2382, 0.0
    %v2388 = vpack.c.bf16 %v2386, %v2384
    %v2389 = vpack.c.bf16 %v2387, %v2385
    %v2390 = vld [vmem:[#allocation8] sm:$0xff]
    %v2391 = vld [vmem:[#allocation8 + $0x8] sm:$0xff]
    %v2392 = vld [vmem:[#allocation8 + $0x10] sm:$0xff]
    %v2393 = vld [vmem:[#allocation8 + $0x18] sm:$0xff]
    %v2394 = vld [vmem:[#allocation8 + $0x20] sm:$0xff]
    %v2395 = vld [vmem:[#allocation8 + $0x28] sm:$0xff]
    %v2396 = vld [vmem:[#allocation8 + $0x30] sm:$0xff]
    %v2397 = vld [vmem:[#allocation8 + $0x38] sm:$0xff]
    %v2398 = vld [vmem:[#allocation8 + $0x40] sm:$0xff]
    %v2399 = vld [vmem:[#allocation8 + $0x48] sm:$0xff]
    %v2400 = vld [vmem:[#allocation8 + $0x50] sm:$0xff]
    %v2401 = vld [vmem:[#allocation8 + $0x58] sm:$0xff]
    %v2402 = vld [vmem:[#allocation8 + $0x60] sm:$0xff]
    %v2403 = vld [vmem:[#allocation8 + $0x68] sm:$0xff]
    %v2404 = vld [vmem:[#allocation8 + $0x70] sm:$0xff]
    %v2405 = vld [vmem:[#allocation8 + $0x78] sm:$0xff]
    %v2406 = vld [vmem:[#allocation8 + $0x80] sm:$0xff]
    %v2407 = vld [vmem:[#allocation8 + $0x88] sm:$0xff]
    %v2408 = vld [vmem:[#allocation8 + $0x90] sm:$0xff]
    %v2409 = vld [vmem:[#allocation8 + $0x98] sm:$0xff]
    %v2410 = vld [vmem:[#allocation8 + $0xa0] sm:$0xff]
    %v2411 = vld [vmem:[#allocation8 + $0xa8] sm:$0xff]
    %v2412 = vld [vmem:[#allocation8 + $0xb0] sm:$0xff]
    %v2413 = vld [vmem:[#allocation8 + $0xb8] sm:$0xff]
    %v2414 = vld [vmem:[#allocation8 + $0xc0] sm:$0xff]
    %v2415 = vld [vmem:[#allocation8 + $0xc8] sm:$0xff]
    %v2416 = vld [vmem:[#allocation8 + $0xd0] sm:$0xff]
    %v2417 = vld [vmem:[#allocation8 + $0xd8] sm:$0xff]
    %v2418 = vld [vmem:[#allocation8 + $0xe0] sm:$0xff]
    %v2419 = vld [vmem:[#allocation8 + $0xe8] sm:$0xff]
    %v2420 = vld [vmem:[#allocation8 + $0xf0] sm:$0xff]
    %v2421 = vld [vmem:[#allocation8 + $0xf8] sm:$0xff]
    %v2422 = vld [vmem:[#allocation10] sm:$0x3]
    %v2424 = vlaneseq
    %v2425 = vshrl.u32 %v2424, 7
    %v2426 = vsub.s32 0, %v2425
    %v2427 = vrot.slane %v2422, %v2426
    %v2428 = vlaneseq
    %v2429 = vshrl.u32 %v2428, 7
    %v2430 = vsub.s32 1, %v2429
    %v2431 = vrot.slane %v2422, %v2430
    %v2466 = vunpack.c.l.b16 %v2390
    %v2467 = vunpack.c.h.b16 %v2390
    %v2468 = vunpack.c.l.b16 %v2391
    %v2469 = vunpack.c.h.b16 %v2391
    %v2470 = vunpack.c.l.b16 %v2392
    %v2471 = vunpack.c.h.b16 %v2392
    %v2472 = vunpack.c.l.b16 %v2393
    %v2473 = vunpack.c.h.b16 %v2393
    %v2474 = vunpack.c.l.b16 %v2394
    %v2475 = vunpack.c.h.b16 %v2394
    %v2476 = vunpack.c.l.b16 %v2395
    %v2477 = vunpack.c.h.b16 %v2395
    %v2478 = vunpack.c.l.b16 %v2396
    %v2479 = vunpack.c.h.b16 %v2396
    %v2480 = vunpack.c.l.b16 %v2397
    %v2481 = vunpack.c.h.b16 %v2397
    %v2482 = vunpack.c.l.b16 %v2398
    %v2483 = vunpack.c.h.b16 %v2398
    %v2484 = vunpack.c.l.b16 %v2399
    %v2485 = vunpack.c.h.b16 %v2399
    %v2486 = vunpack.c.l.b16 %v2400
    %v2487 = vunpack.c.h.b16 %v2400
    %v2488 = vunpack.c.l.b16 %v2401
    %v2489 = vunpack.c.h.b16 %v2401
    %v2490 = vunpack.c.l.b16 %v2402
    %v2491 = vunpack.c.h.b16 %v2402
    %v2492 = vunpack.c.l.b16 %v2403
    %v2493 = vunpack.c.h.b16 %v2403
    %v2494 = vunpack.c.l.b16 %v2404
    %v2495 = vunpack.c.h.b16 %v2404
    %v2496 = vunpack.c.l.b16 %v2405
    %v2497 = vunpack.c.h.b16 %v2405
    %v2498 = vunpack.c.l.b16 %v2406
    %v2499 = vunpack.c.h.b16 %v2406
    %v2500 = vunpack.c.l.b16 %v2407
    %v2501 = vunpack.c.h.b16 %v2407
    %v2502 = vunpack.c.l.b16 %v2408
    %v2503 = vunpack.c.h.b16 %v2408
    %v2504 = vunpack.c.l.b16 %v2409
    %v2505 = vunpack.c.h.b16 %v2409
    %v2506 = vunpack.c.l.b16 %v2410
    %v2507 = vunpack.c.h.b16 %v2410
    %v2508 = vunpack.c.l.b16 %v2411
    %v2509 = vunpack.c.h.b16 %v2411
    %v2510 = vunpack.c.l.b16 %v2412
    %v2511 = vunpack.c.h.b16 %v2412
    %v2512 = vunpack.c.l.b16 %v2413
    %v2513 = vunpack.c.h.b16 %v2413
    %v2514 = vunpack.c.l.b16 %v2414
    %v2515 = vunpack.c.h.b16 %v2414
    %v2516 = vunpack.c.l.b16 %v2415
    %v2517 = vunpack.c.h.b16 %v2415
    %v2518 = vunpack.c.l.b16 %v2416
    %v2519 = vunpack.c.h.b16 %v2416
    %v2520 = vunpack.c.l.b16 %v2417
    %v2521 = vunpack.c.h.b16 %v2417
    %v2522 = vunpack.c.l.b16 %v2418
    %v2523 = vunpack.c.h.b16 %v2418
    %v2524 = vunpack.c.l.b16 %v2419
    %v2525 = vunpack.c.h.b16 %v2419
    %v2526 = vunpack.c.l.b16 %v2420
    %v2527 = vunpack.c.h.b16 %v2420
    %v2528 = vunpack.c.l.b16 %v2421
    %v2529 = vunpack.c.h.b16 %v2421
    %v2530 = vpack.c.b16 %v2468, %v2466
    %v2531 = vpack.c.b16 %v2469, %v2467
    %v2532 = vpack.c.b16 %v2472, %v2470
    %v2533 = vpack.c.b16 %v2473, %v2471
    %v2534 = vpack.c.b16 %v2476, %v2474
    %v2535 = vpack.c.b16 %v2477, %v2475
    %v2536 = vpack.c.b16 %v2480, %v2478
    %v2537 = vpack.c.b16 %v2481, %v2479
    %v2538 = vpack.c.b16 %v2484, %v2482
    %v2539 = vpack.c.b16 %v2485, %v2483
    %v2540 = vpack.c.b16 %v2488, %v2486
    %v2541 = vpack.c.b16 %v2489, %v2487
    %v2542 = vpack.c.b16 %v2492, %v2490
    %v2543 = vpack.c.b16 %v2493, %v2491
    %v2544 = vpack.c.b16 %v2496, %v2494
    %v2545 = vpack.c.b16 %v2497, %v2495
    %v2546 = vpack.c.b16 %v2500, %v2498
    %v2547 = vpack.c.b16 %v2501, %v2499
    %v2548 = vpack.c.b16 %v2504, %v2502
    %v2549 = vpack.c.b16 %v2505, %v2503
    %v2550 = vpack.c.b16 %v2508, %v2506
    %v2551 = vpack.c.b16 %v2509, %v2507
    %v2552 = vpack.c.b16 %v2512, %v2510
    %v2553 = vpack.c.b16 %v2513, %v2511
    %v2554 = vpack.c.b16 %v2516, %v2514
    %v2555 = vpack.c.b16 %v2517, %v2515
    %v2556 = vpack.c.b16 %v2520, %v2518
    %v2557 = vpack.c.b16 %v2521, %v2519
    %v2558 = vpack.c.b16 %v2524, %v2522
    %v2559 = vpack.c.b16 %v2525, %v2523
    %v2560 = vpack.c.b16 %v2528, %v2526
    %v2561 = vpack.c.b16 %v2529, %v2527
    %2594 = vmatprep.subr.bf16.mxu0 %v2531
    %2595 = vmatpush1.bf16.msra.mxu0 %v2530
    %2596 = vmatprep.subr.bf16.mxu0 %v2533
    %2597 = vmatpush1.bf16.msra.mxu0 %v2532
    %2598 = vmatprep.subr.bf16.mxu0 %v2535
    %2599 = vmatpush1.bf16.msra.mxu0 %v2534
    %2600 = vmatprep.subr.bf16.mxu0 %v2537
    %2601 = vmatpush1.bf16.msra.mxu0 %v2536
    %2602 = vmatprep.subr.bf16.mxu0 %v2539
    %2603 = vmatpush1.bf16.msra.mxu0 %v2538
    %2604 = vmatprep.subr.bf16.mxu0 %v2541
    %2605 = vmatpush1.bf16.msra.mxu0 %v2540
    %2606 = vmatprep.subr.bf16.mxu0 %v2543
    %2607 = vmatpush1.bf16.msra.mxu0 %v2542
    %2608 = vmatprep.subr.bf16.mxu0 %v2545
    %2609 = vmatpush1.bf16.msra.mxu0 %v2544
    %2610 = vmatprep.subr.bf16.mxu0 %v2547
    %2611 = vmatpush1.bf16.msra.mxu0 %v2546
    %2612 = vmatprep.subr.bf16.mxu0 %v2549
    %2613 = vmatpush1.bf16.msra.mxu0 %v2548
    %2614 = vmatprep.subr.bf16.mxu0 %v2551
    %2615 = vmatpush1.bf16.msra.mxu0 %v2550
    %2616 = vmatprep.subr.bf16.mxu0 %v2553
    %2617 = vmatpush1.bf16.msra.mxu0 %v2552
    %2618 = vmatprep.subr.bf16.mxu0 %v2555
    %2619 = vmatpush1.bf16.msra.mxu0 %v2554
    %2620 = vmatprep.subr.bf16.mxu0 %v2557
    %2621 = vmatpush1.bf16.msra.mxu0 %v2556
    %2622 = vmatprep.subr.bf16.mxu0 %v2559
    %2623 = vmatpush1.bf16.msra.mxu0 %v2558
    %2624 = vmatprep.subr.bf16.mxu0 %v2561
    %2625 = vmatpush1.bf16.msra.mxu0 %v2560
    %2626 = vmatprep.mubr.bf16.mxu0 %v2389
    %2627 = vmatmul.mubr.bf16.gmra.mrb[0].mxu0 %v2388
    %v2628 = vpop.f32.mrb[0].mxu0
    %v2629 = vadd.f32 %v2427, %v2628
    %v2630 = vpop.f32.mrb[0].mxu0
    %v2631 = vadd.f32 %v2431, %v2630
    %v2632 = vpop.f32.mrb[0].mxu0
    %v2633 = vadd.f32 %v2427, %v2632
    %v2634 = vpop.f32.mrb[0].mxu0
    %v2635 = vadd.f32 %v2431, %v2634
    %2636 = vdwg.mxu0
    %v2637 = vmax.f32 %v2629, 0.0
    %v2638 = vmax.f32 %v2631, 0.0
    %v2639 = vmax.f32 %v2633, 0.0
    %v2640 = vmax.f32 %v2635, 0.0
    %v2641 = vpack.c.bf16 %v2639, %v2637
    %v2642 = vpack.c.bf16 %v2640, %v2638
    %v2643 = vld [vmem:[#allocation11] sm:$0xf]
    %v2644 = vld [vmem:[#allocation11 + $0x4] sm:$0xf]
    %v2645 = vld [vmem:[#allocation11 + $0x8] sm:$0xf]
    %v2646 = vld [vmem:[#allocation11 + $0xc] sm:$0xf]
    %v2647 = vld [vmem:[#allocation11 + $0x10] sm:$0xf]
    %v2648 = vld [vmem:[#allocation11 + $0x14] sm:$0xf]
    %v2649 = vld [vmem:[#allocation11 + $0x18] sm:$0xf]
    %v2650 = vld [vmem:[#allocation11 + $0x1c] sm:$0xf]
    %v2651 = vld [vmem:[#allocation11 + $0x20] sm:$0xf]
    %v2652 = vld [vmem:[#allocation11 + $0x24] sm:$0xf]
    %v2653 = vld [vmem:[#allocation11 + $0x28] sm:$0xf]
    %v2654 = vld [vmem:[#allocation11 + $0x2c] sm:$0xf]
    %v2655 = vld [vmem:[#allocation11 + $0x30] sm:$0xf]
    %v2656 = vld [vmem:[#allocation11 + $0x34] sm:$0xf]
    %v2657 = vld [vmem:[#allocation11 + $0x38] sm:$0xf]
    %v2658 = vld [vmem:[#allocation11 + $0x3c] sm:$0xf]
    %v2659 = vld [vmem:[#allocation11 + $0x40] sm:$0xf]
    %v2660 = vld [vmem:[#allocation11 + $0x44] sm:$0xf]
    %v2661 = vld [vmem:[#allocation11 + $0x48] sm:$0xf]
    %v2662 = vld [vmem:[#allocation11 + $0x4c] sm:$0xf]
    %v2663 = vld [vmem:[#allocation11 + $0x50] sm:$0xf]
    %v2664 = vld [vmem:[#allocation11 + $0x54] sm:$0xf]
    %v2665 = vld [vmem:[#allocation11 + $0x58] sm:$0xf]
    %v2666 = vld [vmem:[#allocation11 + $0x5c] sm:$0xf]
    %v2667 = vld [vmem:[#allocation11 + $0x60] sm:$0xf]
    %v2668 = vld [vmem:[#allocation11 + $0x64] sm:$0xf]
    %v2669 = vld [vmem:[#allocation11 + $0x68] sm:$0xf]
    %v2670 = vld [vmem:[#allocation11 + $0x6c] sm:$0xf]
    %v2671 = vld [vmem:[#allocation11 + $0x70] sm:$0xf]
    %v2672 = vld [vmem:[#allocation11 + $0x74] sm:$0xf]
    %v2673 = vld [vmem:[#allocation11 + $0x78] sm:$0xf]
    %v2674 = vld [vmem:[#allocation11 + $0x7c] sm:$0xf]
    %v2675 = vld [vmem:[#allocation13] sm:$0x1]
    %v2677 = vlaneseq
    %v2678 = vshrl.u32 %v2677, 7
    %v2679 = vsub.s32 0, %v2678
    %v2680 = vrot.slane %v2675, %v2679
    %v2714 = vunpack.c.l.b16 %v2643
    %v2715 = vunpack.c.l.b16 %v2644
    %v2716 = vunpack.c.l.b16 %v2645
    %v2717 = vunpack.c.l.b16 %v2646
    %v2718 = vunpack.c.l.b16 %v2647
    %v2719 = vunpack.c.l.b16 %v2648
    %v2720 = vunpack.c.l.b16 %v2649
    %v2721 = vunpack.c.l.b16 %v2650
    %v2722 = vunpack.c.l.b16 %v2651
    %v2723 = vunpack.c.l.b16 %v2652
    %v2724 = vunpack.c.l.b16 %v2653
    %v2725 = vunpack.c.l.b16 %v2654
    %v2726 = vunpack.c.l.b16 %v2655
    %v2727 = vunpack.c.l.b16 %v2656
    %v2728 = vunpack.c.l.b16 %v2657
    %v2729 = vunpack.c.l.b16 %v2658
    %v2730 = vunpack.c.l.b16 %v2659
    %v2731 = vunpack.c.l.b16 %v2660
    %v2732 = vunpack.c.l.b16 %v2661
    %v2733 = vunpack.c.l.b16 %v2662
    %v2734 = vunpack.c.l.b16 %v2663
    %v2735 = vunpack.c.l.b16 %v2664
    %v2736 = vunpack.c.l.b16 %v2665
    %v2737 = vunpack.c.l.b16 %v2666
    %v2738 = vunpack.c.l.b16 %v2667
    %v2739 = vunpack.c.l.b16 %v2668
    %v2740 = vunpack.c.l.b16 %v2669
    %v2741 = vunpack.c.l.b16 %v2670
    %v2742 = vunpack.c.l.b16 %v2671
    %v2743 = vunpack.c.l.b16 %v2672
    %v2744 = vunpack.c.l.b16 %v2673
    %v2745 = vunpack.c.l.b16 %v2674
    %v2746 = vpack.c.b16 %v2715, %v2714
    %v2747 = vpack.c.b16 %v2717, %v2716
    %v2748 = vpack.c.b16 %v2719, %v2718
    %v2749 = vpack.c.b16 %v2721, %v2720
    %v2750 = vpack.c.b16 %v2723, %v2722
    %v2751 = vpack.c.b16 %v2725, %v2724
    %v2752 = vpack.c.b16 %v2727, %v2726
    %v2753 = vpack.c.b16 %v2729, %v2728
    %v2754 = vpack.c.b16 %v2731, %v2730
    %v2755 = vpack.c.b16 %v2733, %v2732
    %v2756 = vpack.c.b16 %v2735, %v2734
    %v2757 = vpack.c.b16 %v2737, %v2736
    %v2758 = vpack.c.b16 %v2739, %v2738
    %v2759 = vpack.c.b16 %v2741, %v2740
    %v2760 = vpack.c.b16 %v2743, %v2742
    %v2761 = vpack.c.b16 %v2745, %v2744
    %2778 = vmatprep.subr.bf16.mxu0 0
    %2779 = vmatpush1.bf16.msra.mxu0 %v2746
    %2780 = vmatprep.subr.bf16.mxu0 0
    %2781 = vmatpush1.bf16.msra.mxu0 %v2747
    %2782 = vmatprep.subr.bf16.mxu0 0
    %2783 = vmatpush1.bf16.msra.mxu0 %v2748
    %2784 = vmatprep.subr.bf16.mxu0 0
    %2785 = vmatpush1.bf16.msra.mxu0 %v2749
    %2786 = vmatprep.subr.bf16.mxu0 0
    %2787 = vmatpush1.bf16.msra.mxu0 %v2750
    %2788 = vmatprep.subr.bf16.mxu0 0
    %2789 = vmatpush1.bf16.msra.mxu0 %v2751
    %2790 = vmatprep.subr.bf16.mxu0 0
    %2791 = vmatpush1.bf16.msra.mxu0 %v2752
    %2792 = vmatprep.subr.bf16.mxu0 0
    %2793 = vmatpush1.bf16.msra.mxu0 %v2753
    %2794 = vmatprep.subr.bf16.mxu0 0
    %2795 = vmatpush1.bf16.msra.mxu0 %v2754
    %2796 = vmatprep.subr.bf16.mxu0 0
    %2797 = vmatpush1.bf16.msra.mxu0 %v2755
    %2798 = vmatprep.subr.bf16.mxu0 0
    %2799 = vmatpush1.bf16.msra.mxu0 %v2756
    %2800 = vmatprep.subr.bf16.mxu0 0
    %2801 = vmatpush1.bf16.msra.mxu0 %v2757
    %2802 = vmatprep.subr.bf16.mxu0 0
    %2803 = vmatpush1.bf16.msra.mxu0 %v2758
    %2804 = vmatprep.subr.bf16.mxu0 0
    %2805 = vmatpush1.bf16.msra.mxu0 %v2759
    %2806 = vmatprep.subr.bf16.mxu0 0
    %2807 = vmatpush1.bf16.msra.mxu0 %v2760
    %2808 = vmatprep.subr.bf16.mxu0 0
    %2809 = vmatpush1.bf16.msra.mxu0 %v2761
    %2810 = vmatprep.mubr.bf16.mxu0 %v2642
    %2811 = vmatmul.mubr.bf16.gmra.mrb[0].mxu0 %v2641
    %v2812 = vpop.f32.mrb[0].mxu0
    %v2813 = vadd.f32 %v2680, %v2812
    %v2814 = vpop.f32.mrb[0].mxu0
    %v2815 = vpop.f32.mrb[0].mxu0
    %v2816 = vadd.f32 %v2680, %v2815
    %v2817 = vpop.f32.mrb[0].mxu0
    %2818 = vdwg.mxu0
    %v2819 = vpack.c.bf16 %v2816, %v2813
    %v2821 = vunpack.c.l.b16 %v2819
    %v2822 = vunpack.c.h.b16 %v2819
    %v2823 = vpack.c.b16 %v2821, %v2821
    %v2824 = vpack.c.b16 %v2822, %v2822
    %2827 = vst [vmem:[#allocation14] sm:$0xf] %v2823
    %2828 = vst [vmem:[#allocation14 + $0x4] sm:$0xf] %v2824
    // Predicated region
    $region58: #{tpu_custom_call.1} parent=1 // pred_check
      _
    $region59: #{tpu_custom_call.1} parent=1 // pred_check_branch
      %2830 = sbr.rel (0) target = $region61
    $region60: #{tpu_custom_call.1} parent=1 // pred_region
      %s2832 = ssub.s32 128, 128
      %2833 = vsyncadd [#allocation4], %s2832
      %s2834 = sshll.u32 [#allocation14], 4
      %s2835 = int_to_ptr.vmem [resolvable:$true] %s2834
      %2840 = dma.vmem_to_hbm [thread:$0]  %s2835, 128, %s7, [#allocation4], 64, 64, 4
    $region61: #{tpu_custom_call.1} parent=1 // pred_fallthru
      _
    // Predicated region
    $region62: #{tpu_custom_call.1} parent=1 // pred_check
      _
    $region63: #{tpu_custom_call.1} parent=1 // pred_check_branch
      %2842 = sbr.rel (0) target = $region65
    $region64: #{tpu_custom_call.1} parent=1 // pred_region
      %2843 = dma.done [#allocation4], 128
    $region65: #{tpu_custom_call.1} parent=1 // pred_fallthru
      _
    %2844 = vsyncpa [#allocation3], 1
    %2845 = vsyncpa [#allocation6], 1
    %2846 = vsyncpa [#allocation9], 1
    %2847 = vsyncpa [#allocation12], 1
    %2848 = vsyncpa [#allocation4], 1

</llo_original>
